<compile_context>
chip_gen: v7x
topology: tpu7x:2x2x1
jax: 0.10.0
libtpu: 0.0.40
codegen_flags: <defaults>
</compile_context>

<pallas_src>
import functools

import jax
import jax.numpy as jnp
from jax.experimental import pallas as pl
from jax.experimental.pallas import tpu as pltpu


def _round_up(x: int, m: int) -> int:
    return (x + m - 1) // m * m


# --------------------------- recurrent Pallas kernel ---------------------------
def _recurrent_kernel(maxlen_ref, proj_ref, len_ref, w_h_ref,
                      out_ref, h_ref, c_ref, *, hidden_pad, chunk):
    """One AugmentedLstm layer over one (batch-tile, time-chunk) grid cell.

    grid = (batch_tiles [parallel], time_chunks [arbitrary / sequential])

    maxlen_ref : [1] int32 (SMEM, scalar-prefetched) max valid length
    proj_ref   : [chunk, Bt, 6*Hp] f32 hoisted input projection (bias folded in),
                 gate-column order = (input, forget, output, highway_gate,
                 memory_init, highway_proj), each block Hp wide.
    len_ref    : [Bt, 1] int32  per-row valid lengths (resident)
    w_h_ref    : [Hp, 5*Hp]     state_linearity weight (resident, bf16 or f32)
    out_ref    : [chunk, Bt, Hp] f32 per-timestep outputs
    h_ref/c_ref: [Bt, Hp] f32  recurrent state, resident across time chunks;
                 their final values are the layer's final state.
    """
    g = pl.program_id(1)
    Hp = hidden_pad

    @pl.when(g == 0)
    def _init():
        h_ref[...] = jnp.zeros(h_ref.shape, h_ref.dtype)
        c_ref[...] = jnp.zeros(c_ref.shape, c_ref.dtype)

    chunk_start = g * chunk

    # Whole chunk lies past the longest sequence: outputs are zero, the state is
    # untouched, and we skip both the matmuls and all gate math.
    @pl.when(chunk_start >= maxlen_ref[0])
    def _skip():
        out_ref[...] = jnp.zeros(out_ref.shape, out_ref.dtype)

    @pl.when(chunk_start < maxlen_ref[0])
    def _compute():
        w_h = w_h_ref[...]          # [Hp, 5Hp]  hoisted out of the time loop
        lens = len_ref[...]         # [Bt, 1] int32

        def step(tt, carry):
            h, c = carry                                    # [Bt, Hp] f32
            p_in = proj_ref[tt]                             # [Bt, 6Hp] f32
            p_st = jnp.dot(h.astype(w_h.dtype), w_h,
                           preferred_element_type=jnp.float32)   # [Bt, 5Hp]
            pre = p_in[:, :5 * Hp] + p_st

            gates = jax.nn.sigmoid(pre[:, :4 * Hp])         # one wide sigmoid
            in_g = gates[:, 0 * Hp:1 * Hp]
            fg_g = gates[:, 1 * Hp:2 * Hp]
            out_g = gates[:, 2 * Hp:3 * Hp]
            hw_g = gates[:, 3 * Hp:4 * Hp]
            mem_i = jnp.tanh(pre[:, 4 * Hp:5 * Hp])
            hw_p = p_in[:, 5 * Hp:6 * Hp]

            mem = in_g * mem_i + fg_g * c
            y = out_g * jnp.tanh(mem)
            y = hw_g * y + (1.0 - hw_g) * hw_p              # highway connection

            # PackedSequence semantics: rows past their length neither update
            # the recurrent state nor emit non-zero output.
            m = (chunk_start + tt < lens).astype(jnp.float32)    # [Bt, 1]
            new_c = m * mem + (1.0 - m) * c
            new_h = m * y + (1.0 - m) * h
            out_ref[tt] = (m * y).astype(out_ref.dtype)
            return (new_h, new_c)

        h_f, c_f = jax.lax.fori_loop(0, chunk, step, (h_ref[...], c_ref[...]),
                                     unroll=True)
        h_ref[...] = h_f
        c_ref[...] = c_f


def _augmented_lstm_recurrence(proj, lens2d, maxlen, w_h_t, *,
                               chunk, batch_tile, hidden_pad):
    """Run the chunked recurrence for one layer.  Returns (out, final_h, final_c)."""
    T_pad, Bp, _ = proj.shape
    Hp = hidden_pad
    n_chunks = T_pad // chunk
    n_btiles = Bp // batch_tile

    kernel = functools.partial(_recurrent_kernel, hidden_pad=Hp, chunk=chunk)

    grid_spec = pltpu.PrefetchScalarGridSpec(
        num_scalar_prefetch=1,                       # maxlen -> SMEM
        grid=(n_btiles, n_chunks),
        in_specs=[
            pl.BlockSpec((chunk, batch_tile, 6 * Hp), lambda b, g, mx: (g, b, 0)),
            pl.BlockSpec((batch_tile, 1), lambda b, g, mx: (b, 0)),       # lengths
            pl.BlockSpec((Hp, 5 * Hp), lambda b, g, mx: (0, 0)),          # W_h (resident)
        ],
        out_specs=[
            pl.BlockSpec((chunk, batch_tile, Hp), lambda b, g, mx: (g, b, 0)),
            pl.BlockSpec((batch_tile, Hp), lambda b, g, mx: (b, 0)),      # final h
            pl.BlockSpec((batch_tile, Hp), lambda b, g, mx: (b, 0)),      # final c
        ],
    )
    out_shapes = (
        jax.ShapeDtypeStruct((T_pad, Bp, Hp), jnp.float32),
        jax.ShapeDtypeStruct((Bp, Hp), jnp.float32),
        jax.ShapeDtypeStruct((Bp, Hp), jnp.float32),
    )
    return pl.pallas_call(
        kernel,
        out_shape=out_shapes,
        grid_spec=grid_spec,
        compiler_params=pltpu.CompilerParams(
            dimension_semantics=("parallel", "arbitrary"),
            vmem_limit_bytes=48 * 1024 * 1024),
    )(maxlen, proj, lens2d, w_h_t)


# ----------------------------- parameter preparation -----------------------------
# New gate-block order: input, forget, output, highway_gate (all sigmoid),
# memory_init (tanh), highway_proj (linear).
_GATE_ORDER_IN = (0, 1, 3, 4, 2, 5)
_GATE_ORDER_ST = (0, 1, 3, 4, 2)


def prepare_layer_params(w_in, w_h, b_h, d_in, hidden, d_in_pad, hidden_pad):
    """Reorder gate blocks, transpose, and zero-pad PyTorch-layout parameters.

    w_in: [6H, d_in] input_linearity.weight (no bias);  w_h: [5H, H];  b_h: [5H]
    returns w_in_t [d_in_pad, 6*Hp], w_h_t [Hp, 5*Hp], b_fold [6*Hp]
    """
    H, Hp = hidden, hidden_pad

    def pad2(m, rows, cols):
        return jnp.pad(m, ((0, rows - m.shape[0]), (0, cols - m.shape[1])))

    w_in_t = jnp.concatenate(
        [pad2(w_in[k * H:(k + 1) * H].T, d_in_pad, Hp) for k in _GATE_ORDER_IN],
        axis=1)
    w_h_t = jnp.concatenate(
        [pad2(w_h[k * H:(k + 1) * H].T, Hp, Hp) for k in _GATE_ORDER_ST], axis=1)
    b_fold = jnp.concatenate(
        [jnp.pad(b_h[k * H:(k + 1) * H], (0, Hp - H)) for k in _GATE_ORDER_ST]
        + [jnp.zeros((Hp,), b_h.dtype)])          # no bias on highway projection
    return w_in_t, w_h_t, b_fold


# --------------------------------- public wrapper ---------------------------------
def stacked_augmented_lstm(x_btd, lengths, layer_params, *,
                           compute_dtype=jnp.bfloat16, time_chunk=32,
                           batch_tile=None):
    """Forward pass of StackedAugmentedLSTM (eval mode, dropouts = 0).

    x_btd       : [B, T, D] batch-first padded inputs
    lengths     : [B] int   valid lengths (PackedSequence semantics)
    layer_params: list of (w_in [6H, D_l], w_h [5H, H], b_h [5H]) in the original
                  PyTorch/AllenNLP layout.
    returns padded outputs [B, T, H], (final_h [L, B, H], final_c [L, B, H]).
    """
    B, T, D = x_btd.shape
    H = layer_params[0][1].shape[1]

    Hp = _round_up(H, 128)                       # lane-aligned gate blocks
    Bp = _round_up(B, 8)                         # full sublanes
    chunk = min(_round_up(time_chunk, 8), _round_up(T, 8))
    T_pad = _round_up(T, chunk)
    if batch_tile is None:
        batch_tile = Bp                          # v7x: set Bp // 2 to use both TCs
    assert Bp % batch_tile == 0

    lens = jnp.zeros((Bp,), jnp.int32).at[:B].set(lengths.astype(jnp.int32))
    lens2d = lens[:, None]                       # [Bp, 1]
    maxlen = jnp.max(lens).reshape(1)            # scalar-prefetched (SMEM)

    # Single entry transpose to time-major; all layers stay time-major so there
    # are no per-layer transposes (one transpose back at the end).
    x = jnp.transpose(x_btd, (1, 0, 2)).astype(jnp.float32)
    d_in, d_in_p = D, _round_up(D, 128)
    x = jnp.pad(x, ((0, T_pad - T), (0, Bp - B), (0, d_in_p - D)))

    final_h, final_c = [], []
    for (w_in, w_h, b_h) in layer_params:
        w_in_t, w_h_t, b_fold = prepare_layer_params(
            w_in, w_h, b_h, d_in, H, d_in_p, Hp)

        # Hoisted input projection: one big MXU-friendly matmul over all
        # timesteps (bf16 operands, f32 accumulation), bias folded in once.
        proj = jnp.dot(x.reshape(T_pad * Bp, d_in_p).astype(compute_dtype),
                       w_in_t.astype(compute_dtype),
                       preferred_element_type=jnp.float32,
                       precision=jax.lax.Precision.HIGHEST)
        proj = proj.reshape(T_pad, Bp, 6 * Hp) + b_fold

        out, h, c = _augmented_lstm_recurrence(
            proj, lens2d, maxlen, w_h_t.astype(compute_dtype),
            chunk=chunk, batch_tile=batch_tile, hidden_pad=Hp)

        # TODO(synk): layer_dropout / recurrent_dropout are identity here
        # (probability 0 / eval mode); optional initial_state is not supported
        # (zero initial state, as when initial_state=None).
        x = out
        d_in, d_in_p = H, Hp
        final_h.append(h)
        final_c.append(c)

    outputs = jnp.transpose(x, (1, 0, 2))[:B, :T, :H]
    final_h = jnp.stack(final_h, 0)[:, :B, :H]
    final_c = jnp.stack(final_c, 0)[:, :B, :H]
    return outputs, (final_h, final_c)


# ----------------------- pure-JAX reference (for checking) -----------------------
def _reference(x_btd, lengths, layer_params):
    B, T, _ = x_btd.shape
    x = jnp.transpose(x_btd, (1, 0, 2)).astype(jnp.float32)
    mask = (jnp.arange(T)[:, None] < lengths[None, :]).astype(jnp.float32)[:, :, None]
    hs, cs = [], []
    hi = jax.lax.Precision.HIGHEST
    for (w_in, w_h, b_h) in layer_params:
        H = w_h.shape[1]
        w_in_t, w_h_t = w_in.T, w_h.T

        def step(carry, inp, w_in_t=w_in_t, w_h_t=w_h_t, b_h=b_h, H=H):
            h_prev, c_prev = carry
            x_t, m = inp
            pi = jnp.dot(x_t, w_in_t, precision=hi)
            ps = jnp.dot(h_prev, w_h_t, precision=hi) + b_h
            ig = jax.nn.sigmoid(pi[:, 0 * H:1 * H] + ps[:, 0 * H:1 * H])
            fg = jax.nn.sigmoid(pi[:, 1 * H:2 * H] + ps[:, 1 * H:2 * H])
            mi = jnp.tanh(pi[:, 2 * H:3 * H] + ps[:, 2 * H:3 * H])
            og = jax.nn.sigmoid(pi[:, 3 * H:4 * H] + ps[:, 3 * H:4 * H])
            mem = ig * mi + fg * c_prev
            out = og * jnp.tanh(mem)
            hg = jax.nn.sigmoid(pi[:, 4 * H:5 * H] + ps[:, 4 * H:5 * H])
            out = hg * out + (1.0 - hg) * pi[:, 5 * H:6 * H]
            new_c = m * mem + (1.0 - m) * c_prev
            new_h = m * out + (1.0 - m) * h_prev
            return (new_h, new_c), m * out

        init = (jnp.zeros((B, H), jnp.float32), jnp.zeros((B, H), jnp.float32))
        (hf, cf), outs = jax.lax.scan(step, init, (x, mask))
        x = outs
        hs.append(hf)
        cs.append(cf)
    return jnp.transpose(x, (1, 0, 2)), (jnp.stack(hs, 0), jnp.stack(cs, 0))


if __name__ == "__main__":
    B, T, D_IN, H, L = 2, 8, 16, 32, 2

    key = jax.random.PRNGKey(0)
    k_x, k_w = jax.random.split(key)
    x = jax.random.normal(k_x, (B, T, D_IN), dtype=jnp.float32)
    lengths = jnp.array([T, T - 3], dtype=jnp.int32)   # ragged batch (packed semantics)

    # Raw PyTorch/AllenNLP-layout parameters (use_highway=True, no input-proj bias).
    layer_params = []
    d_in = D_IN
    for _ in range(L):
        k_w, k1, k2, k3 = jax.random.split(k_w, 4)
        w_in = 0.1 * jax.random.normal(k1, (6 * H, d_in), dtype=jnp.float32)
        w_h = 0.1 * jax.random.normal(k2, (5 * H, H), dtype=jnp.float32)
        b_h = 0.1 * jax.random.normal(k3, (5 * H,), dtype=jnp.float32)
        layer_params.append((w_in, w_h, b_h))
        d_in = H

    ref_out, (ref_h, ref_c) = _reference(x, lengths, layer_params)

    # Optimized path: bf16 matmul operands, f32 gate math / state.
    out, (fh, fc) = stacked_augmented_lstm(x, lengths, layer_params,
                                           compute_dtype=jnp.bfloat16)
    out = jax.block_until_ready(out)
    fh = jax.block_until_ready(fh)
    fc = jax.block_until_ready(fc)

    assert out.shape == (B, T, H) and fh.shape == (L, B, H) and fc.shape == (L, B, H)
    assert jnp.allclose(out, ref_out, rtol=2e-2, atol=2e-2)
    assert jnp.allclose(fh, ref_h, rtol=2e-2, atol=2e-2)
    assert jnp.allclose(fc, ref_c, rtol=2e-2, atol=2e-2)

    # Full-f32 path: tight check against the pure-JAX reference.
    out32, (fh32, fc32) = stacked_augmented_lstm(x, lengths, layer_params,
                                                 compute_dtype=jnp.float32)
    out32 = jax.block_until_ready(out32)
    assert jnp.allclose(out32, ref_out, rtol=1e-3, atol=1e-3)
    assert jnp.allclose(fh32, ref_h, rtol=1e-3, atol=1e-3)
    assert jnp.allclose(fc32, ref_c, rtol=1e-3, atol=1e-3)

    print("KERNEL_OK")
</pallas_src>

<mosaic_0001>
module attributes {stable_mosaic.version = 11 : i64} {
  func.func @_recurrent_kernel(%arg0: i32, %arg1: i32, %arg2: memref<1xi32, #tpu.memory_space<smem>>, %arg3: memref<8x8x768xf32, #tpu.memory_space<vmem>>, %arg4: memref<8x1xi32, #tpu.memory_space<vmem>>, %arg5: memref<128x640xbf16, #tpu.memory_space<vmem>>, %arg6: memref<8x8x128xf32, #tpu.memory_space<vmem>>, %arg7: memref<8x128xf32, #tpu.memory_space<vmem>>, %arg8: memref<8x128xf32, #tpu.memory_space<vmem>>) attributes {dimension_semantics = [#tpu.dimension_semantics<parallel>, #tpu.dimension_semantics<arbitrary>], iteration_bounds = array<i64: 1, 1>, scalar_prefetch = 1 : i64, scratch_operands = 0 : i64, tpu.core_type = #tpu.core_type<tc>, window_params = [{transform_indices = @transform_0, window_bounds = array<i64: 8, 8, 768>}, {transform_indices = @transform_1, window_bounds = array<i64: 8, 1>}, {pipeline_mode = #tpu.pipeline_mode<synchronous>, transform_indices = @transform_2, window_bounds = array<i64: 128, 640>}, {transform_indices = @transform_3, window_bounds = array<i64: 8, 8, 128>}, {transform_indices = @transform_4, window_bounds = array<i64: 8, 128>}, {transform_indices = @transform_5, window_bounds = array<i64: 8, 128>}]} {
    %c0_i32 = arith.constant 0 : i32
    %0 = arith.cmpi eq, %arg1, %c0_i32 : i32
    %1 = arith.extui %0 : i1 to i32
    %c0_i32_0 = arith.constant 0 : i32
    %2 = arith.cmpi ne, %1, %c0_i32_0 : i32
    scf.if %2 {
      %cst = arith.constant 0.000000e+00 : f32
      %12 = vector.broadcast %cst : f32 to vector<8x128xf32>
      %c0_4 = arith.constant 0 : index
      %c0_5 = arith.constant 0 : index
      %13 = vector.load %arg7[%c0_4, %c0_5] : memref<8x128xf32, #tpu.memory_space<vmem>>, vector<8x128xf32>
      tpu.vector_store %arg7[%c0_4, %c0_5], %12 {strides = array<i32>} : memref<8x128xf32, #tpu.memory_space<vmem>>, vector<8x128xf32>,
      %cst_6 = arith.constant 0.000000e+00 : f32
      %14 = vector.broadcast %cst_6 : f32 to vector<8x128xf32>
      %c0_7 = arith.constant 0 : index
      %c0_8 = arith.constant 0 : index
      %15 = vector.load %arg8[%c0_7, %c0_8] : memref<8x128xf32, #tpu.memory_space<vmem>>, vector<8x128xf32>
      tpu.vector_store %arg8[%c0_7, %c0_8], %14 {strides = array<i32>} : memref<8x128xf32, #tpu.memory_space<vmem>>, vector<8x128xf32>,
    } else {
    }
    %c8_i32 = arith.constant 8 : i32
    %3 = arith.muli %arg1, %c8_i32 : i32
    %c0 = arith.constant 0 : index
    %4 = memref.load %arg2[%c0] : memref<1xi32, #tpu.memory_space<smem>>
    %5 = arith.cmpi sge, %3, %4 : i32
    %6 = arith.extui %5 : i1 to i32
    %c0_i32_1 = arith.constant 0 : i32
    %7 = arith.cmpi ne, %6, %c0_i32_1 : i32
    scf.if %7 {
      %cst = arith.constant 0.000000e+00 : f32
      %12 = vector.broadcast %cst : f32 to vector<8x8x128xf32>
      %c0_4 = arith.constant 0 : index
      %c0_5 = arith.constant 0 : index
      %c0_6 = arith.constant 0 : index
      %13 = vector.load %arg6[%c0_4, %c0_5, %c0_6] : memref<8x8x128xf32, #tpu.memory_space<vmem>>, vector<8x8x128xf32>
      tpu.vector_store %arg6[%c0_4, %c0_5, %c0_6], %12 {strides = array<i32>} : memref<8x8x128xf32, #tpu.memory_space<vmem>>, vector<8x8x128xf32>,
    } else {
    }
    %c0_2 = arith.constant 0 : index
    %8 = memref.load %arg2[%c0_2] : memref<1xi32, #tpu.memory_space<smem>>
    %9 = arith.cmpi slt, %3, %8 : i32
    %10 = arith.extui %9 : i1 to i32
    %c0_i32_3 = arith.constant 0 : i32
    %11 = arith.cmpi ne, %10, %c0_i32_3 : i32
    scf.if %11 {
      %c0_4 = arith.constant 0 : index
      %c0_5 = arith.constant 0 : index
      %12 = vector.load %arg5[%c0_4, %c0_5] : memref<128x640xbf16, #tpu.memory_space<vmem>>, vector<128x640xbf16>
      %c0_6 = arith.constant 0 : index
      %c0_7 = arith.constant 0 : index
      %13 = vector.load %arg4[%c0_6, %c0_7] : memref<8x1xi32, #tpu.memory_space<vmem>>, vector<8x1xi32>
      %c0_8 = arith.constant 0 : index
      %c0_9 = arith.constant 0 : index
      %14 = vector.load %arg7[%c0_8, %c0_9] : memref<8x128xf32, #tpu.memory_space<vmem>>, vector<8x128xf32>
      %c0_10 = arith.constant 0 : index
      %c0_11 = arith.constant 0 : index
      %15 = vector.load %arg8[%c0_10, %c0_11] : memref<8x128xf32, #tpu.memory_space<vmem>>, vector<8x128xf32>
      %c0_i32_12 = arith.constant 0 : i32
      %16 = arith.index_cast %c0_i32_12 : i32 to index
      %c0_13 = arith.constant 0 : index
      %c0_14 = arith.constant 0 : index
      %17 = vector.load %arg3[%16, %c0_13, %c0_14] : memref<8x8x768xf32, #tpu.memory_space<vmem>>, vector<1x8x768xf32>
      %18 = vector.shape_cast %17 : vector<1x8x768xf32> to vector<8x768xf32>
      %19 = arith.truncf %14 : vector<8x128xf32> to vector<8x128xbf16>
      %cst = arith.constant dense<0.000000e+00> : vector<8x640xf32>
      %20 = tpu.matmul %19, %12, %cst {dimension_numbers = #tpu.dot_dimension_numbers<[1], [0], [0], [1], [0, 0, 1, 1], [], []>} : vector<8x128xbf16>, vector<128x640xbf16>, vector<8x640xf32> -> vector<8x640xf32>
      %21 = vector.extract_strided_slice %18 {offsets = [0, 0], sizes = [8, 640], strides = [1, 1]} : vector<8x768xf32> to vector<8x640xf32>
      %22 = arith.addf %21, %20 : vector<8x640xf32>
      %23 = vector.extract_strided_slice %22 {offsets = [0, 0], sizes = [8, 512], strides = [1, 1]} : vector<8x640xf32> to vector<8x512xf32>
      %24 = arith.negf %23 : vector<8x512xf32>
      %25 = math.exp %24 : vector<8x512xf32>
      %cst_15 = arith.constant 1.000000e+00 : f32
      %26 = vector.broadcast %cst_15 : f32 to vector<8x512xf32>
      %27 = arith.addf %26, %25 : vector<8x512xf32>
      %28 = arith.divf %26, %27 : vector<8x512xf32>
      %29 = vector.extract_strided_slice %28 {offsets = [0, 0], sizes = [8, 128], strides = [1, 1]} : vector<8x512xf32> to vector<8x128xf32>
      %30 = vector.extract_strided_slice %28 {offsets = [0, 128], sizes = [8, 128], strides = [1, 1]} : vector<8x512xf32> to vector<8x128xf32>
      %31 = vector.extract_strided_slice %28 {offsets = [0, 256], sizes = [8, 128], strides = [1, 1]} : vector<8x512xf32> to vector<8x128xf32>
      %32 = vector.extract_strided_slice %28 {offsets = [0, 384], sizes = [8, 128], strides = [1, 1]} : vector<8x512xf32> to vector<8x128xf32>
      %33 = vector.extract_strided_slice %22 {offsets = [0, 512], sizes = [8, 128], strides = [1, 1]} : vector<8x640xf32> to vector<8x128xf32>
      %34 = math.tanh %33 : vector<8x128xf32>
      %35 = vector.extract_strided_slice %18 {offsets = [0, 640], sizes = [8, 128], strides = [1, 1]} : vector<8x768xf32> to vector<8x128xf32>
      %36 = arith.mulf %29, %34 : vector<8x128xf32>
      %37 = arith.mulf %30, %15 : vector<8x128xf32>
      %38 = arith.addf %36, %37 : vector<8x128xf32>
      %39 = math.tanh %38 : vector<8x128xf32>
      %40 = arith.mulf %31, %39 : vector<8x128xf32>
      %41 = arith.mulf %32, %40 : vector<8x128xf32>
      %cst_16 = arith.constant 1.000000e+00 : f32
      %42 = vector.broadcast %cst_16 : f32 to vector<8x128xf32>
      %43 = arith.subf %42, %32 : vector<8x128xf32>
      %44 = arith.mulf %43, %35 : vector<8x128xf32>
      %45 = arith.addf %41, %44 : vector<8x128xf32>
      %46 = arith.addi %3, %c0_i32_12 : i32
      %47 = vector.broadcast %46 : i32 to vector<8x1xi32>
      %48 = arith.cmpi slt, %47, %13 : vector<8x1xi32>
      %49 = arith.extui %48 : vector<8x1xi1> to vector<8x1xi32>
      %50 = arith.sitofp %49 : vector<8x1xi32> to vector<8x1xf32>
      %51 = vector.broadcast %50 : vector<8x1xf32> to vector<8x128xf32>
      %52 = arith.mulf %51, %38 : vector<8x128xf32>
      %cst_17 = arith.constant 1.000000e+00 : f32
      %53 = vector.broadcast %cst_17 : f32 to vector<8x1xf32>
      %54 = arith.subf %53, %50 : vector<8x1xf32>
      %55 = vector.broadcast %54 : vector<8x1xf32> to vector<8x128xf32>
      %56 = arith.mulf %55, %15 : vector<8x128xf32>
      %57 = arith.addf %52, %56 : vector<8x128xf32>
      %58 = vector.broadcast %50 : vector<8x1xf32> to vector<8x128xf32>
      %59 = arith.mulf %58, %45 : vector<8x128xf32>
      %cst_18 = arith.constant 1.000000e+00 : f32
      %60 = vector.broadcast %cst_18 : f32 to vector<8x1xf32>
      %61 = arith.subf %60, %50 : vector<8x1xf32>
      %62 = vector.broadcast %61 : vector<8x1xf32> to vector<8x128xf32>
      %63 = arith.mulf %62, %14 : vector<8x128xf32>
      %64 = arith.addf %59, %63 : vector<8x128xf32>
      %65 = vector.broadcast %50 : vector<8x1xf32> to vector<8x128xf32>
      %66 = arith.mulf %65, %45 : vector<8x128xf32>
      %67 = arith.index_cast %c0_i32_12 : i32 to index
      %c0_19 = arith.constant 0 : index
      %c0_20 = arith.constant 0 : index
      %68 = vector.load %arg6[%67, %c0_19, %c0_20] : memref<8x8x128xf32, #tpu.memory_space<vmem>>, vector<1x8x128xf32>
      %69 = vector.shape_cast %68 : vector<1x8x128xf32> to vector<8x128xf32>
      %70 = vector.shape_cast %66 : vector<8x128xf32> to vector<1x8x128xf32>
      tpu.vector_store %arg6[%67, %c0_19, %c0_20], %70 {strides = array<i32>} : memref<8x8x128xf32, #tpu.memory_space<vmem>>, vector<1x8x128xf32>,
      %c1_i32 = arith.constant 1 : i32
      %71 = arith.index_cast %c1_i32 : i32 to index
      %c0_21 = arith.constant 0 : index
      %c0_22 = arith.constant 0 : index
      %72 = vector.load %arg3[%71, %c0_21, %c0_22] : memref<8x8x768xf32, #tpu.memory_space<vmem>>, vector<1x8x768xf32>
      %73 = vector.shape_cast %72 : vector<1x8x768xf32> to vector<8x768xf32>
      %74 = arith.truncf %64 : vector<8x128xf32> to vector<8x128xbf16>
      %cst_23 = arith.constant dense<0.000000e+00> : vector<8x640xf32>
      %75 = tpu.matmul %74, %12, %cst_23 {dimension_numbers = #tpu.dot_dimension_numbers<[1], [0], [0], [1], [0, 0, 1, 1], [], []>} : vector<8x128xbf16>, vector<128x640xbf16>, vector<8x640xf32> -> vector<8x640xf32>
      %76 = vector.extract_strided_slice %73 {offsets = [0, 0], sizes = [8, 640], strides = [1, 1]} : vector<8x768xf32> to vector<8x640xf32>
      %77 = arith.addf %76, %75 : vector<8x640xf32>
      %78 = vector.extract_strided_slice %77 {offsets = [0, 0], sizes = [8, 512], strides = [1, 1]} : vector<8x640xf32> to vector<8x512xf32>
      %79 = arith.negf %78 : vector<8x512xf32>
      %80 = math.exp %79 : vector<8x512xf32>
      %cst_24 = arith.constant 1.000000e+00 : f32
      %81 = vector.broadcast %cst_24 : f32 to vector<8x512xf32>
      %82 = arith.addf %81, %80 : vector<8x512xf32>
      %83 = arith.divf %81, %82 : vector<8x512xf32>
      %84 = vector.extract_strided_slice %83 {offsets = [0, 0], sizes = [8, 128], strides = [1, 1]} : vector<8x512xf32> to vector<8x128xf32>
      %85 = vector.extract_strided_slice %83 {offsets = [0, 128], sizes = [8, 128], strides = [1, 1]} : vector<8x512xf32> to vector<8x128xf32>
      %86 = vector.extract_strided_slice %83 {offsets = [0, 256], sizes = [8, 128], strides = [1, 1]} : vector<8x512xf32> to vector<8x128xf32>
      %87 = vector.extract_strided_slice %83 {offsets = [0, 384], sizes = [8, 128], strides = [1, 1]} : vector<8x512xf32> to vector<8x128xf32>
      %88 = vector.extract_strided_slice %77 {offsets = [0, 512], sizes = [8, 128], strides = [1, 1]} : vector<8x640xf32> to vector<8x128xf32>
      %89 = math.tanh %88 : vector<8x128xf32>
      %90 = vector.extract_strided_slice %73 {offsets = [0, 640], sizes = [8, 128], strides = [1, 1]} : vector<8x768xf32> to vector<8x128xf32>
      %91 = arith.mulf %84, %89 : vector<8x128xf32>
      %92 = arith.mulf %85, %57 : vector<8x128xf32>
      %93 = arith.addf %91, %92 : vector<8x128xf32>
      %94 = math.tanh %93 : vector<8x128xf32>
      %95 = arith.mulf %86, %94 : vector<8x128xf32>
      %96 = arith.mulf %87, %95 : vector<8x128xf32>
      %cst_25 = arith.constant 1.000000e+00 : f32
      %97 = vector.broadcast %cst_25 : f32 to vector<8x128xf32>
      %98 = arith.subf %97, %87 : vector<8x128xf32>
      %99 = arith.mulf %98, %90 : vector<8x128xf32>
      %100 = arith.addf %96, %99 : vector<8x128xf32>
      %101 = arith.addi %3, %c1_i32 : i32
      %102 = vector.broadcast %101 : i32 to vector<8x1xi32>
      %103 = arith.cmpi slt, %102, %13 : vector<8x1xi32>
      %104 = arith.extui %103 : vector<8x1xi1> to vector<8x1xi32>
      %105 = arith.sitofp %104 : vector<8x1xi32> to vector<8x1xf32>
      %106 = vector.broadcast %105 : vector<8x1xf32> to vector<8x128xf32>
      %107 = arith.mulf %106, %93 : vector<8x128xf32>
      %cst_26 = arith.constant 1.000000e+00 : f32
      %108 = vector.broadcast %cst_26 : f32 to vector<8x1xf32>
      %109 = arith.subf %108, %105 : vector<8x1xf32>
      %110 = vector.broadcast %109 : vector<8x1xf32> to vector<8x128xf32>
      %111 = arith.mulf %110, %57 : vector<8x128xf32>
      %112 = arith.addf %107, %111 : vector<8x128xf32>
      %113 = vector.broadcast %105 : vector<8x1xf32> to vector<8x128xf32>
      %114 = arith.mulf %113, %100 : vector<8x128xf32>
      %cst_27 = arith.constant 1.000000e+00 : f32
      %115 = vector.broadcast %cst_27 : f32 to vector<8x1xf32>
      %116 = arith.subf %115, %105 : vector<8x1xf32>
      %117 = vector.broadcast %116 : vector<8x1xf32> to vector<8x128xf32>
      %118 = arith.mulf %117, %64 : vector<8x128xf32>
      %119 = arith.addf %114, %118 : vector<8x128xf32>
      %120 = vector.broadcast %105 : vector<8x1xf32> to vector<8x128xf32>
      %121 = arith.mulf %120, %100 : vector<8x128xf32>
      %122 = arith.index_cast %c1_i32 : i32 to index
      %c0_28 = arith.constant 0 : index
      %c0_29 = arith.constant 0 : index
      %123 = vector.load %arg6[%122, %c0_28, %c0_29] : memref<8x8x128xf32, #tpu.memory_space<vmem>>, vector<1x8x128xf32>
      %124 = vector.shape_cast %123 : vector<1x8x128xf32> to vector<8x128xf32>
      %125 = vector.shape_cast %121 : vector<8x128xf32> to vector<1x8x128xf32>
      tpu.vector_store %arg6[%122, %c0_28, %c0_29], %125 {strides = array<i32>} : memref<8x8x128xf32, #tpu.memory_space<vmem>>, vector<1x8x128xf32>,
      %c2_i32 = arith.constant 2 : i32
      %126 = arith.index_cast %c2_i32 : i32 to index
      %c0_30 = arith.constant 0 : index
      %c0_31 = arith.constant 0 : index
      %127 = vector.load %arg3[%126, %c0_30, %c0_31] : memref<8x8x768xf32, #tpu.memory_space<vmem>>, vector<1x8x768xf32>
      %128 = vector.shape_cast %127 : vector<1x8x768xf32> to vector<8x768xf32>
      %129 = arith.truncf %119 : vector<8x128xf32> to vector<8x128xbf16>
      %cst_32 = arith.constant dense<0.000000e+00> : vector<8x640xf32>
      %130 = tpu.matmul %129, %12, %cst_32 {dimension_numbers = #tpu.dot_dimension_numbers<[1], [0], [0], [1], [0, 0, 1, 1], [], []>} : vector<8x128xbf16>, vector<128x640xbf16>, vector<8x640xf32> -> vector<8x640xf32>
      %131 = vector.extract_strided_slice %128 {offsets = [0, 0], sizes = [8, 640], strides = [1, 1]} : vector<8x768xf32> to vector<8x640xf32>
      %132 = arith.addf %131, %130 : vector<8x640xf32>
      %133 = vector.extract_strided_slice %132 {offsets = [0, 0], sizes = [8, 512], strides = [1, 1]} : vector<8x640xf32> to vector<8x512xf32>
      %134 = arith.negf %133 : vector<8x512xf32>
      %135 = math.exp %134 : vector<8x512xf32>
      %cst_33 = arith.constant 1.000000e+00 : f32
      %136 = vector.broadcast %cst_33 : f32 to vector<8x512xf32>
      %137 = arith.addf %136, %135 : vector<8x512xf32>
      %138 = arith.divf %136, %137 : vector<8x512xf32>
      %139 = vector.extract_strided_slice %138 {offsets = [0, 0], sizes = [8, 128], strides = [1, 1]} : vector<8x512xf32> to vector<8x128xf32>
      %140 = vector.extract_strided_slice %138 {offsets = [0, 128], sizes = [8, 128], strides = [1, 1]} : vector<8x512xf32> to vector<8x128xf32>
      %141 = vector.extract_strided_slice %138 {offsets = [0, 256], sizes = [8, 128], strides = [1, 1]} : vector<8x512xf32> to vector<8x128xf32>
      %142 = vector.extract_strided_slice %138 {offsets = [0, 384], sizes = [8, 128], strides = [1, 1]} : vector<8x512xf32> to vector<8x128xf32>
      %143 = vector.extract_strided_slice %132 {offsets = [0, 512], sizes = [8, 128], strides = [1, 1]} : vector<8x640xf32> to vector<8x128xf32>
      %144 = math.tanh %143 : vector<8x128xf32>
      %145 = vector.extract_strided_slice %128 {offsets = [0, 640], sizes = [8, 128], strides = [1, 1]} : vector<8x768xf32> to vector<8x128xf32>
      %146 = arith.mulf %139, %144 : vector<8x128xf32>
      %147 = arith.mulf %140, %112 : vector<8x128xf32>
      %148 = arith.addf %146, %147 : vector<8x128xf32>
      %149 = math.tanh %148 : vector<8x128xf32>
      %150 = arith.mulf %141, %149 : vector<8x128xf32>
      %151 = arith.mulf %142, %150 : vector<8x128xf32>
      %cst_34 = arith.constant 1.000000e+00 : f32
      %152 = vector.broadcast %cst_34 : f32 to vector<8x128xf32>
      %153 = arith.subf %152, %142 : vector<8x128xf32>
      %154 = arith.mulf %153, %145 : vector<8x128xf32>
      %155 = arith.addf %151, %154 : vector<8x128xf32>
      %156 = arith.addi %3, %c2_i32 : i32
      %157 = vector.broadcast %156 : i32 to vector<8x1xi32>
      %158 = arith.cmpi slt, %157, %13 : vector<8x1xi32>
      %159 = arith.extui %158 : vector<8x1xi1> to vector<8x1xi32>
      %160 = arith.sitofp %159 : vector<8x1xi32> to vector<8x1xf32>
      %161 = vector.broadcast %160 : vector<8x1xf32> to vector<8x128xf32>
      %162 = arith.mulf %161, %148 : vector<8x128xf32>
      %cst_35 = arith.constant 1.000000e+00 : f32
      %163 = vector.broadcast %cst_35 : f32 to vector<8x1xf32>
      %164 = arith.subf %163, %160 : vector<8x1xf32>
      %165 = vector.broadcast %164 : vector<8x1xf32> to vector<8x128xf32>
      %166 = arith.mulf %165, %112 : vector<8x128xf32>
      %167 = arith.addf %162, %166 : vector<8x128xf32>
      %168 = vector.broadcast %160 : vector<8x1xf32> to vector<8x128xf32>
      %169 = arith.mulf %168, %155 : vector<8x128xf32>
      %cst_36 = arith.constant 1.000000e+00 : f32
      %170 = vector.broadcast %cst_36 : f32 to vector<8x1xf32>
      %171 = arith.subf %170, %160 : vector<8x1xf32>
      %172 = vector.broadcast %171 : vector<8x1xf32> to vector<8x128xf32>
      %173 = arith.mulf %172, %119 : vector<8x128xf32>
      %174 = arith.addf %169, %173 : vector<8x128xf32>
      %175 = vector.broadcast %160 : vector<8x1xf32> to vector<8x128xf32>
      %176 = arith.mulf %175, %155 : vector<8x128xf32>
      %177 = arith.index_cast %c2_i32 : i32 to index
      %c0_37 = arith.constant 0 : index
      %c0_38 = arith.constant 0 : index
      %178 = vector.load %arg6[%177, %c0_37, %c0_38] : memref<8x8x128xf32, #tpu.memory_space<vmem>>, vector<1x8x128xf32>
      %179 = vector.shape_cast %178 : vector<1x8x128xf32> to vector<8x128xf32>
      %180 = vector.shape_cast %176 : vector<8x128xf32> to vector<1x8x128xf32>
      tpu.vector_store %arg6[%177, %c0_37, %c0_38], %180 {strides = array<i32>} : memref<8x8x128xf32, #tpu.memory_space<vmem>>, vector<1x8x128xf32>,
      %c3_i32 = arith.constant 3 : i32
      %181 = arith.index_cast %c3_i32 : i32 to index
      %c0_39 = arith.constant 0 : index
      %c0_40 = arith.constant 0 : index
      %182 = vector.load %arg3[%181, %c0_39, %c0_40] : memref<8x8x768xf32, #tpu.memory_space<vmem>>, vector<1x8x768xf32>
      %183 = vector.shape_cast %182 : vector<1x8x768xf32> to vector<8x768xf32>
      %184 = arith.truncf %174 : vector<8x128xf32> to vector<8x128xbf16>
      %cst_41 = arith.constant dense<0.000000e+00> : vector<8x640xf32>
      %185 = tpu.matmul %184, %12, %cst_41 {dimension_numbers = #tpu.dot_dimension_numbers<[1], [0], [0], [1], [0, 0, 1, 1], [], []>} : vector<8x128xbf16>, vector<128x640xbf16>, vector<8x640xf32> -> vector<8x640xf32>
      %186 = vector.extract_strided_slice %183 {offsets = [0, 0], sizes = [8, 640], strides = [1, 1]} : vector<8x768xf32> to vector<8x640xf32>
      %187 = arith.addf %186, %185 : vector<8x640xf32>
      %188 = vector.extract_strided_slice %187 {offsets = [0, 0], sizes = [8, 512], strides = [1, 1]} : vector<8x640xf32> to vector<8x512xf32>
      %189 = arith.negf %188 : vector<8x512xf32>
      %190 = math.exp %189 : vector<8x512xf32>
      %cst_42 = arith.constant 1.000000e+00 : f32
      %191 = vector.broadcast %cst_42 : f32 to vector<8x512xf32>
      %192 = arith.addf %191, %190 : vector<8x512xf32>
      %193 = arith.divf %191, %192 : vector<8x512xf32>
      %194 = vector.extract_strided_slice %193 {offsets = [0, 0], sizes = [8, 128], strides = [1, 1]} : vector<8x512xf32> to vector<8x128xf32>
      %195 = vector.extract_strided_slice %193 {offsets = [0, 128], sizes = [8, 128], strides = [1, 1]} : vector<8x512xf32> to vector<8x128xf32>
      %196 = vector.extract_strided_slice %193 {offsets = [0, 256], sizes = [8, 128], strides = [1, 1]} : vector<8x512xf32> to vector<8x128xf32>
      %197 = vector.extract_strided_slice %193 {offsets = [0, 384], sizes = [8, 128], strides = [1, 1]} : vector<8x512xf32> to vector<8x128xf32>
      %198 = vector.extract_strided_slice %187 {offsets = [0, 512], sizes = [8, 128], strides = [1, 1]} : vector<8x640xf32> to vector<8x128xf32>
      %199 = math.tanh %198 : vector<8x128xf32>
      %200 = vector.extract_strided_slice %183 {offsets = [0, 640], sizes = [8, 128], strides = [1, 1]} : vector<8x768xf32> to vector<8x128xf32>
      %201 = arith.mulf %194, %199 : vector<8x128xf32>
      %202 = arith.mulf %195, %167 : vector<8x128xf32>
      %203 = arith.addf %201, %202 : vector<8x128xf32>
      %204 = math.tanh %203 : vector<8x128xf32>
      %205 = arith.mulf %196, %204 : vector<8x128xf32>
      %206 = arith.mulf %197, %205 : vector<8x128xf32>
      %cst_43 = arith.constant 1.000000e+00 : f32
      %207 = vector.broadcast %cst_43 : f32 to vector<8x128xf32>
      %208 = arith.subf %207, %197 : vector<8x128xf32>
      %209 = arith.mulf %208, %200 : vector<8x128xf32>
      %210 = arith.addf %206, %209 : vector<8x128xf32>
      %211 = arith.addi %3, %c3_i32 : i32
      %212 = vector.broadcast %211 : i32 to vector<8x1xi32>
      %213 = arith.cmpi slt, %212, %13 : vector<8x1xi32>
      %214 = arith.extui %213 : vector<8x1xi1> to vector<8x1xi32>
      %215 = arith.sitofp %214 : vector<8x1xi32> to vector<8x1xf32>
      %216 = vector.broadcast %215 : vector<8x1xf32> to vector<8x128xf32>
      %217 = arith.mulf %216, %203 : vector<8x128xf32>
      %cst_44 = arith.constant 1.000000e+00 : f32
      %218 = vector.broadcast %cst_44 : f32 to vector<8x1xf32>
      %219 = arith.subf %218, %215 : vector<8x1xf32>
      %220 = vector.broadcast %219 : vector<8x1xf32> to vector<8x128xf32>
      %221 = arith.mulf %220, %167 : vector<8x128xf32>
      %222 = arith.addf %217, %221 : vector<8x128xf32>
      %223 = vector.broadcast %215 : vector<8x1xf32> to vector<8x128xf32>
      %224 = arith.mulf %223, %210 : vector<8x128xf32>
      %cst_45 = arith.constant 1.000000e+00 : f32
      %225 = vector.broadcast %cst_45 : f32 to vector<8x1xf32>
      %226 = arith.subf %225, %215 : vector<8x1xf32>
      %227 = vector.broadcast %226 : vector<8x1xf32> to vector<8x128xf32>
      %228 = arith.mulf %227, %174 : vector<8x128xf32>
      %229 = arith.addf %224, %228 : vector<8x128xf32>
      %230 = vector.broadcast %215 : vector<8x1xf32> to vector<8x128xf32>
      %231 = arith.mulf %230, %210 : vector<8x128xf32>
      %232 = arith.index_cast %c3_i32 : i32 to index
      %c0_46 = arith.constant 0 : index
      %c0_47 = arith.constant 0 : index
      %233 = vector.load %arg6[%232, %c0_46, %c0_47] : memref<8x8x128xf32, #tpu.memory_space<vmem>>, vector<1x8x128xf32>
      %234 = vector.shape_cast %233 : vector<1x8x128xf32> to vector<8x128xf32>
      %235 = vector.shape_cast %231 : vector<8x128xf32> to vector<1x8x128xf32>
      tpu.vector_store %arg6[%232, %c0_46, %c0_47], %235 {strides = array<i32>} : memref<8x8x128xf32, #tpu.memory_space<vmem>>, vector<1x8x128xf32>,
      %c4_i32 = arith.constant 4 : i32
      %236 = arith.index_cast %c4_i32 : i32 to index
      %c0_48 = arith.constant 0 : index
      %c0_49 = arith.constant 0 : index
      %237 = vector.load %arg3[%236, %c0_48, %c0_49] : memref<8x8x768xf32, #tpu.memory_space<vmem>>, vector<1x8x768xf32>
      %238 = vector.shape_cast %237 : vector<1x8x768xf32> to vector<8x768xf32>
      %239 = arith.truncf %229 : vector<8x128xf32> to vector<8x128xbf16>
      %cst_50 = arith.constant dense<0.000000e+00> : vector<8x640xf32>
      %240 = tpu.matmul %239, %12, %cst_50 {dimension_numbers = #tpu.dot_dimension_numbers<[1], [0], [0], [1], [0, 0, 1, 1], [], []>} : vector<8x128xbf16>, vector<128x640xbf16>, vector<8x640xf32> -> vector<8x640xf32>
      %241 = vector.extract_strided_slice %238 {offsets = [0, 0], sizes = [8, 640], strides = [1, 1]} : vector<8x768xf32> to vector<8x640xf32>
      %242 = arith.addf %241, %240 : vector<8x640xf32>
      %243 = vector.extract_strided_slice %242 {offsets = [0, 0], sizes = [8, 512], strides = [1, 1]} : vector<8x640xf32> to vector<8x512xf32>
      %244 = arith.negf %243 : vector<8x512xf32>
      %245 = math.exp %244 : vector<8x512xf32>
      %cst_51 = arith.constant 1.000000e+00 : f32
      %246 = vector.broadcast %cst_51 : f32 to vector<8x512xf32>
      %247 = arith.addf %246, %245 : vector<8x512xf32>
      %248 = arith.divf %246, %247 : vector<8x512xf32>
      %249 = vector.extract_strided_slice %248 {offsets = [0, 0], sizes = [8, 128], strides = [1, 1]} : vector<8x512xf32> to vector<8x128xf32>
      %250 = vector.extract_strided_slice %248 {offsets = [0, 128], sizes = [8, 128], strides = [1, 1]} : vector<8x512xf32> to vector<8x128xf32>
      %251 = vector.extract_strided_slice %248 {offsets = [0, 256], sizes = [8, 128], strides = [1, 1]} : vector<8x512xf32> to vector<8x128xf32>
      %252 = vector.extract_strided_slice %248 {offsets = [0, 384], sizes = [8, 128], strides = [1, 1]} : vector<8x512xf32> to vector<8x128xf32>
      %253 = vector.extract_strided_slice %242 {offsets = [0, 512], sizes = [8, 128], strides = [1, 1]} : vector<8x640xf32> to vector<8x128xf32>
      %254 = math.tanh %253 : vector<8x128xf32>
      %255 = vector.extract_strided_slice %238 {offsets = [0, 640], sizes = [8, 128], strides = [1, 1]} : vector<8x768xf32> to vector<8x128xf32>
      %256 = arith.mulf %249, %254 : vector<8x128xf32>
      %257 = arith.mulf %250, %222 : vector<8x128xf32>
      %258 = arith.addf %256, %257 : vector<8x128xf32>
      %259 = math.tanh %258 : vector<8x128xf32>
      %260 = arith.mulf %251, %259 : vector<8x128xf32>
      %261 = arith.mulf %252, %260 : vector<8x128xf32>
      %cst_52 = arith.constant 1.000000e+00 : f32
      %262 = vector.broadcast %cst_52 : f32 to vector<8x128xf32>
      %263 = arith.subf %262, %252 : vector<8x128xf32>
      %264 = arith.mulf %263, %255 : vector<8x128xf32>
      %265 = arith.addf %261, %264 : vector<8x128xf32>
      %266 = arith.addi %3, %c4_i32 : i32
      %267 = vector.broadcast %266 : i32 to vector<8x1xi32>
      %268 = arith.cmpi slt, %267, %13 : vector<8x1xi32>
      %269 = arith.extui %268 : vector<8x1xi1> to vector<8x1xi32>
      %270 = arith.sitofp %269 : vector<8x1xi32> to vector<8x1xf32>
      %271 = vector.broadcast %270 : vector<8x1xf32> to vector<8x128xf32>
      %272 = arith.mulf %271, %258 : vector<8x128xf32>
      %cst_53 = arith.constant 1.000000e+00 : f32
      %273 = vector.broadcast %cst_53 : f32 to vector<8x1xf32>
      %274 = arith.subf %273, %270 : vector<8x1xf32>
      %275 = vector.broadcast %274 : vector<8x1xf32> to vector<8x128xf32>
      %276 = arith.mulf %275, %222 : vector<8x128xf32>
      %277 = arith.addf %272, %276 : vector<8x128xf32>
      %278 = vector.broadcast %270 : vector<8x1xf32> to vector<8x128xf32>
      %279 = arith.mulf %278, %265 : vector<8x128xf32>
      %cst_54 = arith.constant 1.000000e+00 : f32
      %280 = vector.broadcast %cst_54 : f32 to vector<8x1xf32>
      %281 = arith.subf %280, %270 : vector<8x1xf32>
      %282 = vector.broadcast %281 : vector<8x1xf32> to vector<8x128xf32>
      %283 = arith.mulf %282, %229 : vector<8x128xf32>
      %284 = arith.addf %279, %283 : vector<8x128xf32>
      %285 = vector.broadcast %270 : vector<8x1xf32> to vector<8x128xf32>
      %286 = arith.mulf %285, %265 : vector<8x128xf32>
      %287 = arith.index_cast %c4_i32 : i32 to index
      %c0_55 = arith.constant 0 : index
      %c0_56 = arith.constant 0 : index
      %288 = vector.load %arg6[%287, %c0_55, %c0_56] : memref<8x8x128xf32, #tpu.memory_space<vmem>>, vector<1x8x128xf32>
      %289 = vector.shape_cast %288 : vector<1x8x128xf32> to vector<8x128xf32>
      %290 = vector.shape_cast %286 : vector<8x128xf32> to vector<1x8x128xf32>
      tpu.vector_store %arg6[%287, %c0_55, %c0_56], %290 {strides = array<i32>} : memref<8x8x128xf32, #tpu.memory_space<vmem>>, vector<1x8x128xf32>,
      %c5_i32 = arith.constant 5 : i32
      %291 = arith.index_cast %c5_i32 : i32 to index
      %c0_57 = arith.constant 0 : index
      %c0_58 = arith.constant 0 : index
      %292 = vector.load %arg3[%291, %c0_57, %c0_58] : memref<8x8x768xf32, #tpu.memory_space<vmem>>, vector<1x8x768xf32>
      %293 = vector.shape_cast %292 : vector<1x8x768xf32> to vector<8x768xf32>
      %294 = arith.truncf %284 : vector<8x128xf32> to vector<8x128xbf16>
      %cst_59 = arith.constant dense<0.000000e+00> : vector<8x640xf32>
      %295 = tpu.matmul %294, %12, %cst_59 {dimension_numbers = #tpu.dot_dimension_numbers<[1], [0], [0], [1], [0, 0, 1, 1], [], []>} : vector<8x128xbf16>, vector<128x640xbf16>, vector<8x640xf32> -> vector<8x640xf32>
      %296 = vector.extract_strided_slice %293 {offsets = [0, 0], sizes = [8, 640], strides = [1, 1]} : vector<8x768xf32> to vector<8x640xf32>
      %297 = arith.addf %296, %295 : vector<8x640xf32>
      %298 = vector.extract_strided_slice %297 {offsets = [0, 0], sizes = [8, 512], strides = [1, 1]} : vector<8x640xf32> to vector<8x512xf32>
      %299 = arith.negf %298 : vector<8x512xf32>
      %300 = math.exp %299 : vector<8x512xf32>
      %cst_60 = arith.constant 1.000000e+00 : f32
      %301 = vector.broadcast %cst_60 : f32 to vector<8x512xf32>
      %302 = arith.addf %301, %300 : vector<8x512xf32>
      %303 = arith.divf %301, %302 : vector<8x512xf32>
      %304 = vector.extract_strided_slice %303 {offsets = [0, 0], sizes = [8, 128], strides = [1, 1]} : vector<8x512xf32> to vector<8x128xf32>
      %305 = vector.extract_strided_slice %303 {offsets = [0, 128], sizes = [8, 128], strides = [1, 1]} : vector<8x512xf32> to vector<8x128xf32>
      %306 = vector.extract_strided_slice %303 {offsets = [0, 256], sizes = [8, 128], strides = [1, 1]} : vector<8x512xf32> to vector<8x128xf32>
      %307 = vector.extract_strided_slice %303 {offsets = [0, 384], sizes = [8, 128], strides = [1, 1]} : vector<8x512xf32> to vector<8x128xf32>
      %308 = vector.extract_strided_slice %297 {offsets = [0, 512], sizes = [8, 128], strides = [1, 1]} : vector<8x640xf32> to vector<8x128xf32>
      %309 = math.tanh %308 : vector<8x128xf32>
      %310 = vector.extract_strided_slice %293 {offsets = [0, 640], sizes = [8, 128], strides = [1, 1]} : vector<8x768xf32> to vector<8x128xf32>
      %311 = arith.mulf %304, %309 : vector<8x128xf32>
      %312 = arith.mulf %305, %277 : vector<8x128xf32>
      %313 = arith.addf %311, %312 : vector<8x128xf32>
      %314 = math.tanh %313 : vector<8x128xf32>
      %315 = arith.mulf %306, %314 : vector<8x128xf32>
      %316 = arith.mulf %307, %315 : vector<8x128xf32>
      %cst_61 = arith.constant 1.000000e+00 : f32
      %317 = vector.broadcast %cst_61 : f32 to vector<8x128xf32>
      %318 = arith.subf %317, %307 : vector<8x128xf32>
      %319 = arith.mulf %318, %310 : vector<8x128xf32>
      %320 = arith.addf %316, %319 : vector<8x128xf32>
      %321 = arith.addi %3, %c5_i32 : i32
      %322 = vector.broadcast %321 : i32 to vector<8x1xi32>
      %323 = arith.cmpi slt, %322, %13 : vector<8x1xi32>
      %324 = arith.extui %323 : vector<8x1xi1> to vector<8x1xi32>
      %325 = arith.sitofp %324 : vector<8x1xi32> to vector<8x1xf32>
      %326 = vector.broadcast %325 : vector<8x1xf32> to vector<8x128xf32>
      %327 = arith.mulf %326, %313 : vector<8x128xf32>
      %cst_62 = arith.constant 1.000000e+00 : f32
      %328 = vector.broadcast %cst_62 : f32 to vector<8x1xf32>
      %329 = arith.subf %328, %325 : vector<8x1xf32>
      %330 = vector.broadcast %329 : vector<8x1xf32> to vector<8x128xf32>
      %331 = arith.mulf %330, %277 : vector<8x128xf32>
      %332 = arith.addf %327, %331 : vector<8x128xf32>
      %333 = vector.broadcast %325 : vector<8x1xf32> to vector<8x128xf32>
      %334 = arith.mulf %333, %320 : vector<8x128xf32>
      %cst_63 = arith.constant 1.000000e+00 : f32
      %335 = vector.broadcast %cst_63 : f32 to vector<8x1xf32>
      %336 = arith.subf %335, %325 : vector<8x1xf32>
      %337 = vector.broadcast %336 : vector<8x1xf32> to vector<8x128xf32>
      %338 = arith.mulf %337, %284 : vector<8x128xf32>
      %339 = arith.addf %334, %338 : vector<8x128xf32>
      %340 = vector.broadcast %325 : vector<8x1xf32> to vector<8x128xf32>
      %341 = arith.mulf %340, %320 : vector<8x128xf32>
      %342 = arith.index_cast %c5_i32 : i32 to index
      %c0_64 = arith.constant 0 : index
      %c0_65 = arith.constant 0 : index
      %343 = vector.load %arg6[%342, %c0_64, %c0_65] : memref<8x8x128xf32, #tpu.memory_space<vmem>>, vector<1x8x128xf32>
      %344 = vector.shape_cast %343 : vector<1x8x128xf32> to vector<8x128xf32>
      %345 = vector.shape_cast %341 : vector<8x128xf32> to vector<1x8x128xf32>
      tpu.vector_store %arg6[%342, %c0_64, %c0_65], %345 {strides = array<i32>} : memref<8x8x128xf32, #tpu.memory_space<vmem>>, vector<1x8x128xf32>,
      %c6_i32 = arith.constant 6 : i32
      %346 = arith.index_cast %c6_i32 : i32 to index
      %c0_66 = arith.constant 0 : index
      %c0_67 = arith.constant 0 : index
      %347 = vector.load %arg3[%346, %c0_66, %c0_67] : memref<8x8x768xf32, #tpu.memory_space<vmem>>, vector<1x8x768xf32>
      %348 = vector.shape_cast %347 : vector<1x8x768xf32> to vector<8x768xf32>
      %349 = arith.truncf %339 : vector<8x128xf32> to vector<8x128xbf16>
      %cst_68 = arith.constant dense<0.000000e+00> : vector<8x640xf32>
      %350 = tpu.matmul %349, %12, %cst_68 {dimension_numbers = #tpu.dot_dimension_numbers<[1], [0], [0], [1], [0, 0, 1, 1], [], []>} : vector<8x128xbf16>, vector<128x640xbf16>, vector<8x640xf32> -> vector<8x640xf32>
      %351 = vector.extract_strided_slice %348 {offsets = [0, 0], sizes = [8, 640], strides = [1, 1]} : vector<8x768xf32> to vector<8x640xf32>
      %352 = arith.addf %351, %350 : vector<8x640xf32>
      %353 = vector.extract_strided_slice %352 {offsets = [0, 0], sizes = [8, 512], strides = [1, 1]} : vector<8x640xf32> to vector<8x512xf32>
      %354 = arith.negf %353 : vector<8x512xf32>
      %355 = math.exp %354 : vector<8x512xf32>
      %cst_69 = arith.constant 1.000000e+00 : f32
      %356 = vector.broadcast %cst_69 : f32 to vector<8x512xf32>
      %357 = arith.addf %356, %355 : vector<8x512xf32>
      %358 = arith.divf %356, %357 : vector<8x512xf32>
      %359 = vector.extract_strided_slice %358 {offsets = [0, 0], sizes = [8, 128], strides = [1, 1]} : vector<8x512xf32> to vector<8x128xf32>
      %360 = vector.extract_strided_slice %358 {offsets = [0, 128], sizes = [8, 128], strides = [1, 1]} : vector<8x512xf32> to vector<8x128xf32>
      %361 = vector.extract_strided_slice %358 {offsets = [0, 256], sizes = [8, 128], strides = [1, 1]} : vector<8x512xf32> to vector<8x128xf32>
      %362 = vector.extract_strided_slice %358 {offsets = [0, 384], sizes = [8, 128], strides = [1, 1]} : vector<8x512xf32> to vector<8x128xf32>
      %363 = vector.extract_strided_slice %352 {offsets = [0, 512], sizes = [8, 128], strides = [1, 1]} : vector<8x640xf32> to vector<8x128xf32>
      %364 = math.tanh %363 : vector<8x128xf32>
      %365 = vector.extract_strided_slice %348 {offsets = [0, 640], sizes = [8, 128], strides = [1, 1]} : vector<8x768xf32> to vector<8x128xf32>
      %366 = arith.mulf %359, %364 : vector<8x128xf32>
      %367 = arith.mulf %360, %332 : vector<8x128xf32>
      %368 = arith.addf %366, %367 : vector<8x128xf32>
      %369 = math.tanh %368 : vector<8x128xf32>
      %370 = arith.mulf %361, %369 : vector<8x128xf32>
      %371 = arith.mulf %362, %370 : vector<8x128xf32>
      %cst_70 = arith.constant 1.000000e+00 : f32
      %372 = vector.broadcast %cst_70 : f32 to vector<8x128xf32>
      %373 = arith.subf %372, %362 : vector<8x128xf32>
      %374 = arith.mulf %373, %365 : vector<8x128xf32>
      %375 = arith.addf %371, %374 : vector<8x128xf32>
      %376 = arith.addi %3, %c6_i32 : i32
      %377 = vector.broadcast %376 : i32 to vector<8x1xi32>
      %378 = arith.cmpi slt, %377, %13 : vector<8x1xi32>
      %379 = arith.extui %378 : vector<8x1xi1> to vector<8x1xi32>
      %380 = arith.sitofp %379 : vector<8x1xi32> to vector<8x1xf32>
      %381 = vector.broadcast %380 : vector<8x1xf32> to vector<8x128xf32>
      %382 = arith.mulf %381, %368 : vector<8x128xf32>
      %cst_71 = arith.constant 1.000000e+00 : f32
      %383 = vector.broadcast %cst_71 : f32 to vector<8x1xf32>
      %384 = arith.subf %383, %380 : vector<8x1xf32>
      %385 = vector.broadcast %384 : vector<8x1xf32> to vector<8x128xf32>
      %386 = arith.mulf %385, %332 : vector<8x128xf32>
      %387 = arith.addf %382, %386 : vector<8x128xf32>
      %388 = vector.broadcast %380 : vector<8x1xf32> to vector<8x128xf32>
      %389 = arith.mulf %388, %375 : vector<8x128xf32>
      %cst_72 = arith.constant 1.000000e+00 : f32
      %390 = vector.broadcast %cst_72 : f32 to vector<8x1xf32>
      %391 = arith.subf %390, %380 : vector<8x1xf32>
      %392 = vector.broadcast %391 : vector<8x1xf32> to vector<8x128xf32>
      %393 = arith.mulf %392, %339 : vector<8x128xf32>
      %394 = arith.addf %389, %393 : vector<8x128xf32>
      %395 = vector.broadcast %380 : vector<8x1xf32> to vector<8x128xf32>
      %396 = arith.mulf %395, %375 : vector<8x128xf32>
      %397 = arith.index_cast %c6_i32 : i32 to index
      %c0_73 = arith.constant 0 : index
      %c0_74 = arith.constant 0 : index
      %398 = vector.load %arg6[%397, %c0_73, %c0_74] : memref<8x8x128xf32, #tpu.memory_space<vmem>>, vector<1x8x128xf32>
      %399 = vector.shape_cast %398 : vector<1x8x128xf32> to vector<8x128xf32>
      %400 = vector.shape_cast %396 : vector<8x128xf32> to vector<1x8x128xf32>
      tpu.vector_store %arg6[%397, %c0_73, %c0_74], %400 {strides = array<i32>} : memref<8x8x128xf32, #tpu.memory_space<vmem>>, vector<1x8x128xf32>,
      %c7_i32 = arith.constant 7 : i32
      %401 = arith.index_cast %c7_i32 : i32 to index
      %c0_75 = arith.constant 0 : index
      %c0_76 = arith.constant 0 : index
      %402 = vector.load %arg3[%401, %c0_75, %c0_76] : memref<8x8x768xf32, #tpu.memory_space<vmem>>, vector<1x8x768xf32>
      %403 = vector.shape_cast %402 : vector<1x8x768xf32> to vector<8x768xf32>
      %404 = arith.truncf %394 : vector<8x128xf32> to vector<8x128xbf16>
      %cst_77 = arith.constant dense<0.000000e+00> : vector<8x640xf32>
      %405 = tpu.matmul %404, %12, %cst_77 {dimension_numbers = #tpu.dot_dimension_numbers<[1], [0], [0], [1], [0, 0, 1, 1], [], []>} : vector<8x128xbf16>, vector<128x640xbf16>, vector<8x640xf32> -> vector<8x640xf32>
      %406 = vector.extract_strided_slice %403 {offsets = [0, 0], sizes = [8, 640], strides = [1, 1]} : vector<8x768xf32> to vector<8x640xf32>
      %407 = arith.addf %406, %405 : vector<8x640xf32>
      %408 = vector.extract_strided_slice %407 {offsets = [0, 0], sizes = [8, 512], strides = [1, 1]} : vector<8x640xf32> to vector<8x512xf32>
      %409 = arith.negf %408 : vector<8x512xf32>
      %410 = math.exp %409 : vector<8x512xf32>
      %cst_78 = arith.constant 1.000000e+00 : f32
      %411 = vector.broadcast %cst_78 : f32 to vector<8x512xf32>
      %412 = arith.addf %411, %410 : vector<8x512xf32>
      %413 = arith.divf %411, %412 : vector<8x512xf32>
      %414 = vector.extract_strided_slice %413 {offsets = [0, 0], sizes = [8, 128], strides = [1, 1]} : vector<8x512xf32> to vector<8x128xf32>
      %415 = vector.extract_strided_slice %413 {offsets = [0, 128], sizes = [8, 128], strides = [1, 1]} : vector<8x512xf32> to vector<8x128xf32>
      %416 = vector.extract_strided_slice %413 {offsets = [0, 256], sizes = [8, 128], strides = [1, 1]} : vector<8x512xf32> to vector<8x128xf32>
      %417 = vector.extract_strided_slice %413 {offsets = [0, 384], sizes = [8, 128], strides = [1, 1]} : vector<8x512xf32> to vector<8x128xf32>
      %418 = vector.extract_strided_slice %407 {offsets = [0, 512], sizes = [8, 128], strides = [1, 1]} : vector<8x640xf32> to vector<8x128xf32>
      %419 = math.tanh %418 : vector<8x128xf32>
      %420 = vector.extract_strided_slice %403 {offsets = [0, 640], sizes = [8, 128], strides = [1, 1]} : vector<8x768xf32> to vector<8x128xf32>
      %421 = arith.mulf %414, %419 : vector<8x128xf32>
      %422 = arith.mulf %415, %387 : vector<8x128xf32>
      %423 = arith.addf %421, %422 : vector<8x128xf32>
      %424 = math.tanh %423 : vector<8x128xf32>
      %425 = arith.mulf %416, %424 : vector<8x128xf32>
      %426 = arith.mulf %417, %425 : vector<8x128xf32>
      %cst_79 = arith.constant 1.000000e+00 : f32
      %427 = vector.broadcast %cst_79 : f32 to vector<8x128xf32>
      %428 = arith.subf %427, %417 : vector<8x128xf32>
      %429 = arith.mulf %428, %420 : vector<8x128xf32>
      %430 = arith.addf %426, %429 : vector<8x128xf32>
      %431 = arith.addi %3, %c7_i32 : i32
      %432 = vector.broadcast %431 : i32 to vector<8x1xi32>
      %433 = arith.cmpi slt, %432, %13 : vector<8x1xi32>
      %434 = arith.extui %433 : vector<8x1xi1> to vector<8x1xi32>
      %435 = arith.sitofp %434 : vector<8x1xi32> to vector<8x1xf32>
      %436 = vector.broadcast %435 : vector<8x1xf32> to vector<8x128xf32>
      %437 = arith.mulf %436, %423 : vector<8x128xf32>
      %cst_80 = arith.constant 1.000000e+00 : f32
      %438 = vector.broadcast %cst_80 : f32 to vector<8x1xf32>
      %439 = arith.subf %438, %435 : vector<8x1xf32>
      %440 = vector.broadcast %439 : vector<8x1xf32> to vector<8x128xf32>
      %441 = arith.mulf %440, %387 : vector<8x128xf32>
      %442 = arith.addf %437, %441 : vector<8x128xf32>
      %443 = vector.broadcast %435 : vector<8x1xf32> to vector<8x128xf32>
      %444 = arith.mulf %443, %430 : vector<8x128xf32>
      %cst_81 = arith.constant 1.000000e+00 : f32
      %445 = vector.broadcast %cst_81 : f32 to vector<8x1xf32>
      %446 = arith.subf %445, %435 : vector<8x1xf32>
      %447 = vector.broadcast %446 : vector<8x1xf32> to vector<8x128xf32>
      %448 = arith.mulf %447, %394 : vector<8x128xf32>
      %449 = arith.addf %444, %448 : vector<8x128xf32>
      %450 = vector.broadcast %435 : vector<8x1xf32> to vector<8x128xf32>
      %451 = arith.mulf %450, %430 : vector<8x128xf32>
      %452 = arith.index_cast %c7_i32 : i32 to index
      %c0_82 = arith.constant 0 : index
      %c0_83 = arith.constant 0 : index
      %453 = vector.load %arg6[%452, %c0_82, %c0_83] : memref<8x8x128xf32, #tpu.memory_space<vmem>>, vector<1x8x128xf32>
      %454 = vector.shape_cast %453 : vector<1x8x128xf32> to vector<8x128xf32>
      %455 = vector.shape_cast %451 : vector<8x128xf32> to vector<1x8x128xf32>
      tpu.vector_store %arg6[%452, %c0_82, %c0_83], %455 {strides = array<i32>} : memref<8x8x128xf32, #tpu.memory_space<vmem>>, vector<1x8x128xf32>,
      %c8_i32_84 = arith.constant 8 : i32
      %c0_85 = arith.constant 0 : index
      %c0_86 = arith.constant 0 : index
      %456 = vector.load %arg7[%c0_85, %c0_86] : memref<8x128xf32, #tpu.memory_space<vmem>>, vector<8x128xf32>
      tpu.vector_store %arg7[%c0_85, %c0_86], %449 {strides = array<i32>} : memref<8x128xf32, #tpu.memory_space<vmem>>, vector<8x128xf32>,
      %c0_87 = arith.constant 0 : index
      %c0_88 = arith.constant 0 : index
      %457 = vector.load %arg8[%c0_87, %c0_88] : memref<8x128xf32, #tpu.memory_space<vmem>>, vector<8x128xf32>
      tpu.vector_store %arg8[%c0_87, %c0_88], %442 {strides = array<i32>} : memref<8x128xf32, #tpu.memory_space<vmem>>, vector<8x128xf32>,
    } else {
    }
    return
  }
  func.func @transform_0(%arg0: i32, %arg1: i32, %arg2: memref<1xi32, #tpu.memory_space<smem>>) -> (i32, i32, i32) {
    %c0_i32 = arith.constant 0 : i32
    %c0_i32_0 = arith.constant 0 : i32
    return %arg1, %arg0, %c0_i32 : i32, i32, i32
  }
  func.func @transform_1(%arg0: i32, %arg1: i32, %arg2: memref<1xi32, #tpu.memory_space<smem>>) -> (i32, i32) {
    %c0_i32 = arith.constant 0 : i32
    %c0_i32_0 = arith.constant 0 : i32
    return %arg0, %c0_i32 : i32, i32
  }
  func.func @transform_2(%arg0: i32, %arg1: i32, %arg2: memref<1xi32, #tpu.memory_space<smem>>) -> (i32, i32) {
    %c0_i32 = arith.constant 0 : i32
    %c0_i32_0 = arith.constant 0 : i32
    %c0_i32_1 = arith.constant 0 : i32
    return %c0_i32, %c0_i32_0 : i32, i32
  }
  func.func @transform_3(%arg0: i32, %arg1: i32, %arg2: memref<1xi32, #tpu.memory_space<smem>>) -> (i32, i32, i32) {
    %c0_i32 = arith.constant 0 : i32
    %c0_i32_0 = arith.constant 0 : i32
    return %arg1, %arg0, %c0_i32 : i32, i32, i32
  }
  func.func @transform_4(%arg0: i32, %arg1: i32, %arg2: memref<1xi32, #tpu.memory_space<smem>>) -> (i32, i32) {
    %c0_i32 = arith.constant 0 : i32
    %c0_i32_0 = arith.constant 0 : i32
    return %arg0, %c0_i32 : i32, i32
  }
  func.func @transform_5(%arg0: i32, %arg1: i32, %arg2: memref<1xi32, #tpu.memory_space<smem>>) -> (i32, i32) {
    %c0_i32 = arith.constant 0 : i32
    %c0_i32_0 = arith.constant 0 : i32
    return %arg0, %c0_i32 : i32, i32
  }
}

</mosaic_0001>

<llo_original>
// kernel: tpu_custom_call.1
$region0: #{tpu_custom_call.1}
  #allocation0 [shape = 'u32[]', space=smem, size = 0x4, offset = 0x4, fixed_abs, tag = 'smem constant byte address 0x4 - core index']
  #allocation1 [shape = 'u32[144,128]{1,0:T(1,128)}', space=vmem, size = 0x12000, scoped, tag = 'internal scratch']
  #allocation2 [shape = 's32[1]{0}', space=sflag, size = 0x4, scoped, tag = 'scoped memory for tpu_custom_call.1']
  #allocation3 [shape = 's32[1]{0:T(128)S(6)}', space=smem, size = 0x200, scoped, tag = 'prefetched SMEM operand 0']
  %s0 = inlined_call_operand.<no memory space> [shape: s32[1], index: 0, kind: input, shape index: {}]
  %s1 = inlined_call_operand.hbm [shape: f32[8,8,768], index: 1, kind: input, shape index: {}]
  %s2 = inlined_call_operand.vmem [shape: s32[8,1], index: 2, kind: input, shape index: {}]
  %s3 = inlined_call_operand.hbm [shape: bf16[128,640], index: 3, kind: input, shape index: {}]
  %s4 = inlined_call_operand.hbm [shape: f32[8,8,128], index: 4, kind: output, shape index: {0}]
  %s5 = inlined_call_operand.hbm [shape: f32[8,128], index: 5, kind: output, shape index: {1}]
  %s6 = inlined_call_operand.hbm [shape: f32[8,128], index: 6, kind: output, shape index: {2}]
  %7 = xla_tuple %s4, %s5, %s6
  %s8 = sld [smem:[#allocation0]]
  $region58: #{tpu_custom_call.1} parent=0
    _
  %s10 = ssub.s32 1, %s8
  %s11 = scalar_select 0, %s10, %s8
  %12 = sst [smem:[#allocation3]] %s0
  $region1: #{tpu_custom_call.1} parent=0
    #allocation4 [shape = 'u8[196608]{0}', space=vmem, size = 0x30000, scoped, tag = 'input window, operand 1, single buffered']
    #allocation5 [shape = 's32[1]{0}', space=sflag, size = 0x4, scoped, tag = 'scoped memory for tpu_custom_call.1']
    #allocation6 [shape = 's32[1]{0}', space=sflag, size = 0x4, scoped, tag = 'scoped memory for tpu_custom_call.1']
    #allocation7 [shape = 'u8[163840]{0}', space=vmem, size = 0x28000, scoped, tag = 'input window, operand 3, single buffered']
    #allocation8 [shape = 's32[1]{0}', space=sflag, size = 0x4, scoped, tag = 'scoped memory for tpu_custom_call.1']
    #allocation9 [shape = 'u8[32768]{0}', space=vmem, size = 0x8000, scoped, tag = 'output window, operand 0, single buffered']
    #allocation10 [shape = 'u8[4096]{0}', space=vmem, size = 0x1000, scoped, tag = 'output window, operand 1, single buffered']
    #allocation11 [shape = 's32[1]{0}', space=sflag, size = 0x4, scoped, tag = 'scoped memory for tpu_custom_call.1']
    #allocation12 [shape = 'u8[4096]{0}', space=vmem, size = 0x1000, scoped, tag = 'output window, operand 2, single buffered']
    %13 = vsyncpa [#allocation5], 0
    %14 = vsyncpa [#allocation8], 0
    %15 = vsyncpa [#allocation6], 0
    %16 = vsyncpa [#allocation11], 0
    // Predicated region
    $region2: #{tpu_custom_call.1} parent=1 // pred_check
      _
    $region3: #{tpu_custom_call.1} parent=1 // pred_check_branch
      %18 = sbr.rel (0) target = $region5
    $region4: #{tpu_custom_call.1} parent=1 // pred_region
      %s20 = ssub.s32 6144, 6144
      %21 = vsyncadd [#allocation5], %s20
      %s22 = sshll.u32 [#allocation4], 4
      %s23 = int_to_ptr.vmem [resolvable:$true] %s22
      %28 = dma.hbm_to_vmem [thread:$0]  %s1, 6144, %s23, [#allocation5], 768, 768, 48
    $region5: #{tpu_custom_call.1} parent=1 // pred_fallthru
      _
    // Predicated region
    $region6: #{tpu_custom_call.1} parent=1 // pred_check
      _
    $region7: #{tpu_custom_call.1} parent=1 // pred_check_branch
      %30 = sbr.rel (0) target = $region9
    $region8: #{tpu_custom_call.1} parent=1 // pred_region
      _
    $region9: #{tpu_custom_call.1} parent=1 // pred_fallthru
      _
    // Predicated region
    $region10: #{tpu_custom_call.1} parent=1 // pred_check
      _
    $region11: #{tpu_custom_call.1} parent=1 // pred_check_branch
      %32 = sbr.rel (0) target = $region13
    $region12: #{tpu_custom_call.1} parent=1 // pred_region
      %s34 = ssub.s32 5120, 5120
      %35 = vsyncadd [#allocation8], %s34
      %s36 = sshll.u32 [#allocation7], 4
      %s37 = int_to_ptr.vmem [resolvable:$true] %s36
      %42 = dma.hbm_to_vmem [thread:$0]  %s3, 5120, %s37, [#allocation8], 320, 320, 20
    $region13: #{tpu_custom_call.1} parent=1 // pred_fallthru
      _
    // Predicated region
    $region14: #{tpu_custom_call.1} parent=1 // pred_check
      _
    $region15: #{tpu_custom_call.1} parent=1 // pred_check_branch
      %44 = sbr.rel (0) target = $region17
    $region16: #{tpu_custom_call.1} parent=1 // pred_region
      %45 = dma.done [#allocation5], 6144
    $region17: #{tpu_custom_call.1} parent=1 // pred_fallthru
      _
    // Predicated region
    $region18: #{tpu_custom_call.1} parent=1 // pred_check
      _
    $region19: #{tpu_custom_call.1} parent=1 // pred_check_branch
      %47 = sbr.rel (0) target = $region21
    $region20: #{tpu_custom_call.1} parent=1 // pred_region
      %48 = dma.done [#allocation8], 5120
    $region21: #{tpu_custom_call.1} parent=1 // pred_fallthru
      _
    %p50 = scmp.eq.s32.totalorder 0, 0
    // Predicated region
    $region22: #{tpu_custom_call.1} parent=1 // pred_check
      %p51 = pneg %p50
    $region23: #{tpu_custom_call.1} parent=1 // pred_check_branch
      %53 = sbr.rel (%p51) target = $region25
    $region24: #{tpu_custom_call.1} parent=1 // pred_region
      %54 = vst [vmem:[#allocation10] sm:$0xff] 0.0
      %55 = vst [vmem:[#allocation12] sm:$0xff] 0.0
    $region25: #{tpu_custom_call.1} parent=1 // pred_fallthru
      _
    %s56 = smul.u32 0, 8
    %s57 = sld [smem:[#allocation3]]
    %p58 = scmp.ge.s32.totalorder %s56, %s57
    // Predicated region
    $region26: #{tpu_custom_call.1} parent=1 // pred_check
      %p59 = pneg %p58
    $region27: #{tpu_custom_call.1} parent=1 // pred_check_branch
      %61 = sbr.rel (%p59) target = $region29
    $region28: #{tpu_custom_call.1} parent=1 // pred_region
      %62 = vst [vmem:[#allocation9] sm:$0xff] 0.0
      %63 = vst [vmem:[#allocation9 + $0x8] sm:$0xff] 0.0
      %64 = vst [vmem:[#allocation9 + $0x10] sm:$0xff] 0.0
      %65 = vst [vmem:[#allocation9 + $0x18] sm:$0xff] 0.0
      %66 = vst [vmem:[#allocation9 + $0x20] sm:$0xff] 0.0
      %67 = vst [vmem:[#allocation9 + $0x28] sm:$0xff] 0.0
      %68 = vst [vmem:[#allocation9 + $0x30] sm:$0xff] 0.0
      %69 = vst [vmem:[#allocation9 + $0x38] sm:$0xff] 0.0
    $region29: #{tpu_custom_call.1} parent=1 // pred_fallthru
      _
    %s70 = sld [smem:[#allocation3]]
    %p71 = scmp.lt.s32.totalorder %s56, %s70
    // Predicated region
    $region30: #{tpu_custom_call.1} parent=1 // pred_check
      %p72 = pneg %p71
    $region31: #{tpu_custom_call.1} parent=1 // pred_check_branch
      %74 = sbr.rel (%p72) target = $region33
    $region32: #{tpu_custom_call.1} parent=1 // pred_region
      %v75 = vld [vmem:[#allocation7] sm:$0xff]
      %v76 = vld [vmem:[#allocation7 + $0x8] sm:$0xff]
      %v77 = vld [vmem:[#allocation7 + $0x10] sm:$0xf]
      %v78 = vld [vmem:[#allocation7 + $0x14] sm:$0xff]
      %v79 = vld [vmem:[#allocation7 + $0x1c] sm:$0xff]
      %v80 = vld [vmem:[#allocation7 + $0x24] sm:$0xf]
      %v81 = vld [vmem:[#allocation7 + $0x28] sm:$0xff]
      %v82 = vld [vmem:[#allocation7 + $0x30] sm:$0xff]
      %v83 = vld [vmem:[#allocation7 + $0x38] sm:$0xf]
      %v84 = vld [vmem:[#allocation7 + $0x3c] sm:$0xff]
      %v85 = vld [vmem:[#allocation7 + $0x44] sm:$0xff]
      %v86 = vld [vmem:[#allocation7 + $0x4c] sm:$0xf]
      %v87 = vld [vmem:[#allocation7 + $0x50] sm:$0xff]
      %v88 = vld [vmem:[#allocation7 + $0x58] sm:$0xff]
      %v89 = vld [vmem:[#allocation7 + $0x60] sm:$0xf]
      %v90 = vld [vmem:[#allocation7 + $0x64] sm:$0xff]
      %v91 = vld [vmem:[#allocation7 + $0x6c] sm:$0xff]
      %v92 = vld [vmem:[#allocation7 + $0x74] sm:$0xf]
      %v93 = vld [vmem:[#allocation7 + $0x78] sm:$0xff]
      %v94 = vld [vmem:[#allocation7 + $0x80] sm:$0xff]
      %v95 = vld [vmem:[#allocation7 + $0x88] sm:$0xf]
      %v96 = vld [vmem:[#allocation7 + $0x8c] sm:$0xff]
      %v97 = vld [vmem:[#allocation7 + $0x94] sm:$0xff]
      %v98 = vld [vmem:[#allocation7 + $0x9c] sm:$0xf]
      %v99 = vld [vmem:[#allocation7 + $0xa0] sm:$0xff]
      %v100 = vld [vmem:[#allocation7 + $0xa8] sm:$0xff]
      %v101 = vld [vmem:[#allocation7 + $0xb0] sm:$0xf]
      %v102 = vld [vmem:[#allocation7 + $0xb4] sm:$0xff]
      %v103 = vld [vmem:[#allocation7 + $0xbc] sm:$0xff]
      %v104 = vld [vmem:[#allocation7 + $0xc4] sm:$0xf]
      %v105 = vld [vmem:[#allocation7 + $0xc8] sm:$0xff]
      %v106 = vld [vmem:[#allocation7 + $0xd0] sm:$0xff]
      %v107 = vld [vmem:[#allocation7 + $0xd8] sm:$0xf]
      %v108 = vld [vmem:[#allocation7 + $0xdc] sm:$0xff]
      %v109 = vld [vmem:[#allocation7 + $0xe4] sm:$0xff]
      %v110 = vld [vmem:[#allocation7 + $0xec] sm:$0xf]
      %v111 = vld [vmem:[#allocation7 + $0xf0] sm:$0xff]
      %v112 = vld [vmem:[#allocation7 + $0xf8] sm:$0xff]
      %v113 = vld [vmem:[#allocation7 + $0x100] sm:$0xf]
      %v114 = vld [vmem:[#allocation7 + $0x104] sm:$0xff]
      %v115 = vld [vmem:[#allocation7 + $0x10c] sm:$0xff]
      %v116 = vld [vmem:[#allocation7 + $0x114] sm:$0xf]
      %v117 = vld [vmem:[#allocation7 + $0x118] sm:$0xff]
      %v118 = vld [vmem:[#allocation7 + $0x120] sm:$0xff]
      %v119 = vld [vmem:[#allocation7 + $0x128] sm:$0xf]
      %v120 = vld [vmem:[#allocation7 + $0x12c] sm:$0xff]
      %v121 = vld [vmem:[#allocation7 + $0x134] sm:$0xff]
      %v122 = vld [vmem:[#allocation7 + $0x13c] sm:$0xf]
      %v123 = vld [vmem:[%s2] sm:$0xff]
      %v124 = vld [vmem:[#allocation10] sm:$0xff]
      %v125 = vld [vmem:[#allocation12] sm:$0xff]
      %v126 = vld [vmem:[#allocation4] sm:$0xff]
      %v127 = vld [vmem:[#allocation4 + $0x8] sm:$0xff]
      %v128 = vld [vmem:[#allocation4 + $0x10] sm:$0xff]
      %v129 = vld [vmem:[#allocation4 + $0x18] sm:$0xff]
      %v130 = vld [vmem:[#allocation4 + $0x20] sm:$0xff]
      %v131 = vld [vmem:[#allocation4 + $0x28] sm:$0xff]
      %v132 = vpack.c.bf16 %v124, %v124
      %v181 = vunpack.c.l.b16 %v75
      %v182 = vunpack.c.h.b16 %v75
      %v183 = vunpack.c.l.b16 %v76
      %v184 = vunpack.c.h.b16 %v76
      %v185 = vunpack.c.l.b16 %v77
      %v186 = vunpack.c.l.b16 %v78
      %v187 = vunpack.c.h.b16 %v78
      %v188 = vunpack.c.l.b16 %v79
      %v189 = vunpack.c.h.b16 %v79
      %v190 = vunpack.c.l.b16 %v80
      %v191 = vunpack.c.l.b16 %v81
      %v192 = vunpack.c.h.b16 %v81
      %v193 = vunpack.c.l.b16 %v82
      %v194 = vunpack.c.h.b16 %v82
      %v195 = vunpack.c.l.b16 %v83
      %v196 = vunpack.c.l.b16 %v84
      %v197 = vunpack.c.h.b16 %v84
      %v198 = vunpack.c.l.b16 %v85
      %v199 = vunpack.c.h.b16 %v85
      %v200 = vunpack.c.l.b16 %v86
      %v201 = vunpack.c.l.b16 %v87
      %v202 = vunpack.c.h.b16 %v87
      %v203 = vunpack.c.l.b16 %v88
      %v204 = vunpack.c.h.b16 %v88
      %v205 = vunpack.c.l.b16 %v89
      %v206 = vunpack.c.l.b16 %v90
      %v207 = vunpack.c.h.b16 %v90
      %v208 = vunpack.c.l.b16 %v91
      %v209 = vunpack.c.h.b16 %v91
      %v210 = vunpack.c.l.b16 %v92
      %v211 = vunpack.c.l.b16 %v93
      %v212 = vunpack.c.h.b16 %v93
      %v213 = vunpack.c.l.b16 %v94
      %v214 = vunpack.c.h.b16 %v94
      %v215 = vunpack.c.l.b16 %v95
      %v216 = vunpack.c.l.b16 %v96
      %v217 = vunpack.c.h.b16 %v96
      %v218 = vunpack.c.l.b16 %v97
      %v219 = vunpack.c.h.b16 %v97
      %v220 = vunpack.c.l.b16 %v98
      %v221 = vunpack.c.l.b16 %v99
      %v222 = vunpack.c.h.b16 %v99
      %v223 = vunpack.c.l.b16 %v100
      %v224 = vunpack.c.h.b16 %v100
      %v225 = vunpack.c.l.b16 %v101
      %v226 = vunpack.c.l.b16 %v102
      %v227 = vunpack.c.h.b16 %v102
      %v228 = vunpack.c.l.b16 %v103
      %v229 = vunpack.c.h.b16 %v103
      %v230 = vunpack.c.l.b16 %v104
      %v231 = vunpack.c.l.b16 %v105
      %v232 = vunpack.c.h.b16 %v105
      %v233 = vunpack.c.l.b16 %v106
      %v234 = vunpack.c.h.b16 %v106
      %v235 = vunpack.c.l.b16 %v107
      %v236 = vunpack.c.l.b16 %v108
      %v237 = vunpack.c.h.b16 %v108
      %v238 = vunpack.c.l.b16 %v109
      %v239 = vunpack.c.h.b16 %v109
      %v240 = vunpack.c.l.b16 %v110
      %v241 = vunpack.c.l.b16 %v111
      %v242 = vunpack.c.h.b16 %v111
      %v243 = vunpack.c.l.b16 %v112
      %v244 = vunpack.c.h.b16 %v112
      %v245 = vunpack.c.l.b16 %v113
      %v246 = vunpack.c.l.b16 %v114
      %v247 = vunpack.c.h.b16 %v114
      %v248 = vunpack.c.l.b16 %v115
      %v249 = vunpack.c.h.b16 %v115
      %v250 = vunpack.c.l.b16 %v116
      %v251 = vunpack.c.l.b16 %v117
      %v252 = vunpack.c.h.b16 %v117
      %v253 = vunpack.c.l.b16 %v118
      %v254 = vunpack.c.h.b16 %v118
      %v255 = vunpack.c.l.b16 %v119
      %v256 = vunpack.c.l.b16 %v120
      %v257 = vunpack.c.h.b16 %v120
      %v258 = vunpack.c.l.b16 %v121
      %v259 = vunpack.c.h.b16 %v121
      %v260 = vunpack.c.l.b16 %v122
      %v261 = vpack.c.b16 %v186, %v181
      %v262 = vpack.c.b16 %v187, %v182
      %v263 = vpack.c.b16 %v188, %v183
      %v264 = vpack.c.b16 %v189, %v184
      %v265 = vpack.c.b16 %v190, %v185
      %v266 = vpack.c.b16 %v196, %v191
      %v267 = vpack.c.b16 %v197, %v192
      %v268 = vpack.c.b16 %v198, %v193
      %v269 = vpack.c.b16 %v199, %v194
      %v270 = vpack.c.b16 %v200, %v195
      %v271 = vpack.c.b16 %v206, %v201
      %v272 = vpack.c.b16 %v207, %v202
      %v273 = vpack.c.b16 %v208, %v203
      %v274 = vpack.c.b16 %v209, %v204
      %v275 = vpack.c.b16 %v210, %v205
      %v276 = vpack.c.b16 %v216, %v211
      %v277 = vpack.c.b16 %v217, %v212
      %v278 = vpack.c.b16 %v218, %v213
      %v279 = vpack.c.b16 %v219, %v214
      %v280 = vpack.c.b16 %v220, %v215
      %v281 = vpack.c.b16 %v226, %v221
      %v282 = vpack.c.b16 %v227, %v222
      %v283 = vpack.c.b16 %v228, %v223
      %v284 = vpack.c.b16 %v229, %v224
      %v285 = vpack.c.b16 %v230, %v225
      %v286 = vpack.c.b16 %v236, %v231
      %v287 = vpack.c.b16 %v237, %v232
      %v288 = vpack.c.b16 %v238, %v233
      %v289 = vpack.c.b16 %v239, %v234
      %v290 = vpack.c.b16 %v240, %v235
      %v291 = vpack.c.b16 %v246, %v241
      %v292 = vpack.c.b16 %v247, %v242
      %v293 = vpack.c.b16 %v248, %v243
      %v294 = vpack.c.b16 %v249, %v244
      %v295 = vpack.c.b16 %v250, %v245
      %v296 = vpack.c.b16 %v256, %v251
      %v297 = vpack.c.b16 %v257, %v252
      %v298 = vpack.c.b16 %v258, %v253
      %v299 = vpack.c.b16 %v259, %v254
      %v300 = vpack.c.b16 %v260, %v255
      %341 = vmatprep.subr.bf16.mxu0 %v262
      %342 = vmatpush1.bf16.msra.mxu0 %v261
      %343 = vmatprep.subr.bf16.mxu0 %v267
      %344 = vmatpush1.bf16.msra.mxu0 %v266
      %345 = vmatprep.subr.bf16.mxu0 %v272
      %346 = vmatpush1.bf16.msra.mxu0 %v271
      %347 = vmatprep.subr.bf16.mxu0 %v277
      %348 = vmatpush1.bf16.msra.mxu0 %v276
      %349 = vmatprep.subr.bf16.mxu0 %v282
      %350 = vmatpush1.bf16.msra.mxu0 %v281
      %351 = vmatprep.subr.bf16.mxu0 %v287
      %352 = vmatpush1.bf16.msra.mxu0 %v286
      %353 = vmatprep.subr.bf16.mxu0 %v292
      %354 = vmatpush1.bf16.msra.mxu0 %v291
      %355 = vmatprep.subr.bf16.mxu0 %v297
      %356 = vmatpush1.bf16.msra.mxu0 %v296
      %357 = vmatprep.subr.bf16.mxu0 0
      %358 = vmatpush1.bf16.msra.mxu0 0
      %359 = vmatprep.subr.bf16.mxu0 0
      %360 = vmatpush1.bf16.msra.mxu0 0
      %361 = vmatprep.subr.bf16.mxu0 0
      %362 = vmatpush1.bf16.msra.mxu0 0
      %363 = vmatprep.subr.bf16.mxu0 0
      %364 = vmatpush1.bf16.msra.mxu0 0
      %365 = vmatprep.subr.bf16.mxu0 0
      %366 = vmatpush1.bf16.msra.mxu0 0
      %367 = vmatprep.subr.bf16.mxu0 0
      %368 = vmatpush1.bf16.msra.mxu0 0
      %369 = vmatprep.subr.bf16.mxu0 0
      %370 = vmatpush1.bf16.msra.mxu0 0
      %371 = vmatprep.subr.bf16.mxu0 0
      %372 = vmatpush1.bf16.msra.mxu0 0
      %373 = vmatprep.mubr.bf16.mxu0 0
      %374 = vmatmul.mubr.bf16.gmra.mrb[0].mxu0 %v132
      %v375 = vpop.f32.mrb[0].mxu0
      %v376 = vadd.f32 0.0, %v375
      %v377 = vpop.f32.mrb[0].mxu0
      %v378 = vadd.f32 0.0, %v377
      %v379 = vpop.f32.mrb[0].mxu0
      %v380 = vpop.f32.mrb[0].mxu0
      %381 = vdwg.mxu0
      %382 = vmatprep.subr.bf16.mxu0 %v264
      %383 = vmatpush1.bf16.msra.mxu0 %v263
      %384 = vmatprep.subr.bf16.mxu0 %v269
      %385 = vmatpush1.bf16.msra.mxu0 %v268
      %386 = vmatprep.subr.bf16.mxu0 %v274
      %387 = vmatpush1.bf16.msra.mxu0 %v273
      %388 = vmatprep.subr.bf16.mxu0 %v279
      %389 = vmatpush1.bf16.msra.mxu0 %v278
      %390 = vmatprep.subr.bf16.mxu0 %v284
      %391 = vmatpush1.bf16.msra.mxu0 %v283
      %392 = vmatprep.subr.bf16.mxu0 %v289
      %393 = vmatpush1.bf16.msra.mxu0 %v288
      %394 = vmatprep.subr.bf16.mxu0 %v294
      %395 = vmatpush1.bf16.msra.mxu0 %v293
      %396 = vmatprep.subr.bf16.mxu0 %v299
      %397 = vmatpush1.bf16.msra.mxu0 %v298
      %398 = vmatprep.subr.bf16.mxu0 0
      %399 = vmatpush1.bf16.msra.mxu0 0
      %400 = vmatprep.subr.bf16.mxu0 0
      %401 = vmatpush1.bf16.msra.mxu0 0
      %402 = vmatprep.subr.bf16.mxu0 0
      %403 = vmatpush1.bf16.msra.mxu0 0
      %404 = vmatprep.subr.bf16.mxu0 0
      %405 = vmatpush1.bf16.msra.mxu0 0
      %406 = vmatprep.subr.bf16.mxu0 0
      %407 = vmatpush1.bf16.msra.mxu0 0
      %408 = vmatprep.subr.bf16.mxu0 0
      %409 = vmatpush1.bf16.msra.mxu0 0
      %410 = vmatprep.subr.bf16.mxu0 0
      %411 = vmatpush1.bf16.msra.mxu0 0
      %412 = vmatprep.subr.bf16.mxu0 0
      %413 = vmatpush1.bf16.msra.mxu0 0
      %414 = vmatprep.mubr.bf16.mxu0 0
      %415 = vmatmul.mubr.bf16.gmra.mrb[0].mxu0 %v132
      %v416 = vpop.f32.mrb[0].mxu0
      %v417 = vadd.f32 0.0, %v416
      %v418 = vpop.f32.mrb[0].mxu0
      %v419 = vadd.f32 0.0, %v418
      %v420 = vpop.f32.mrb[0].mxu0
      %v421 = vpop.f32.mrb[0].mxu0
      %422 = vdwg.mxu0
      %423 = vmatprep.subr.bf16.mxu0 0
      %424 = vmatpush1.bf16.msra.mxu0 %v265
      %425 = vmatprep.subr.bf16.mxu0 0
      %426 = vmatpush1.bf16.msra.mxu0 %v270
      %427 = vmatprep.subr.bf16.mxu0 0
      %428 = vmatpush1.bf16.msra.mxu0 %v275
      %429 = vmatprep.subr.bf16.mxu0 0
      %430 = vmatpush1.bf16.msra.mxu0 %v280
      %431 = vmatprep.subr.bf16.mxu0 0
      %432 = vmatpush1.bf16.msra.mxu0 %v285
      %433 = vmatprep.subr.bf16.mxu0 0
      %434 = vmatpush1.bf16.msra.mxu0 %v290
      %435 = vmatprep.subr.bf16.mxu0 0
      %436 = vmatpush1.bf16.msra.mxu0 %v295
      %437 = vmatprep.subr.bf16.mxu0 0
      %438 = vmatpush1.bf16.msra.mxu0 %v300
      %439 = vmatprep.subr.bf16.mxu0 0
      %440 = vmatpush1.bf16.msra.mxu0 0
      %441 = vmatprep.subr.bf16.mxu0 0
      %442 = vmatpush1.bf16.msra.mxu0 0
      %443 = vmatprep.subr.bf16.mxu0 0
      %444 = vmatpush1.bf16.msra.mxu0 0
      %445 = vmatprep.subr.bf16.mxu0 0
      %446 = vmatpush1.bf16.msra.mxu0 0
      %447 = vmatprep.subr.bf16.mxu0 0
      %448 = vmatpush1.bf16.msra.mxu0 0
      %449 = vmatprep.subr.bf16.mxu0 0
      %450 = vmatpush1.bf16.msra.mxu0 0
      %451 = vmatprep.subr.bf16.mxu0 0
      %452 = vmatpush1.bf16.msra.mxu0 0
      %453 = vmatprep.subr.bf16.mxu0 0
      %454 = vmatpush1.bf16.msra.mxu0 0
      %455 = vmatprep.mubr.bf16.mxu0 0
      %456 = vmatmul.mubr.bf16.gmra.mrb[0].mxu0 %v132
      %v457 = vpop.f32.mrb[0].mxu0
      %v458 = vadd.f32 0.0, %v457
      %v459 = vpop.f32.mrb[0].mxu0
      %v460 = vpop.f32.mrb[0].mxu0
      %v461 = vpop.f32.mrb[0].mxu0
      %462 = vdwg.mxu0
      %v463 = vadd.f32 %v126, %v376
      %v464 = vadd.f32 %v127, %v378
      %v465 = vadd.f32 %v128, %v417
      %v466 = vadd.f32 %v129, %v419
      %v467 = vadd.f32 %v130, %v458
      %v468 = vxor.u32 %v463, 2147483648
      %v469 = vxor.u32 %v464, 2147483648
      %v470 = vxor.u32 %v465, 2147483648
      %v471 = vxor.u32 %v466, 2147483648
      %v472 = vmul.f32 %v468, 1.442695
      %v473 = vpow.pop %v472
      %v474 = vmul.f32 %v469, 1.442695
      %v475 = vpow.pop %v474
      %v476 = vmul.f32 %v470, 1.442695
      %v477 = vpow.pop %v476
      %v478 = vmul.f32 %v471, 1.442695
      %v479 = vpow.pop %v478
      %v480 = vadd.f32 %v473, 1.0
      %v481 = vadd.f32 %v475, 1.0
      %v482 = vadd.f32 %v477, 1.0
      %v483 = vadd.f32 %v479, 1.0
      %v484 = vrcp.pop %v480
      %v485 = vmul.f32 1.0, %v484
      %v486 = vrcp.pop %v481
      %v487 = vmul.f32 1.0, %v486
      %v488 = vrcp.pop %v482
      %v489 = vmul.f32 1.0, %v488
      %v490 = vrcp.pop %v483
      %v491 = vmul.f32 1.0, %v490
      %v492 = vtanh.pop %v467
      %v493 = vmul.f32 %v485, %v492
      %v494 = vmul.f32 %v487, %v125
      %v495 = vadd.f32 %v493, %v494
      %v496 = vtanh.pop %v495
      %v497 = vmul.f32 %v489, %v496
      %v498 = vmul.f32 %v491, %v497
      %v499 = vsub.f32 1.0, %v491
      %v500 = vmul.f32 %v499, %v131
      %v501 = vadd.f32 %v498, %v500
      %v502 = vstv %s56
      %vm503 = vcmp.lt.s32.totalorder %v502, %v123
      %v504 = vsel %vm503, 1, 0
      %v505 = vcvt.s32.f32 %v504
      %507 = vset.pattern.permute.xlu0 0
      %508 = vperm.xlu0 %507, %v505
      %v509 = vpop.permute.xlu0 %508
      %v511 = vmul.f32 %v509, %v495
      %v512 = vsub.f32 1.0, %v505
      %514 = vset.pattern.permute.xlu0 0
      %515 = vperm.xlu0 %514, %v512
      %v516 = vpop.permute.xlu0 %515
      %v518 = vmul.f32 %v516, %v125
      %v519 = vadd.f32 %v511, %v518
      %v520 = vmul.f32 %v509, %v501
      %v521 = vmul.f32 %v516, %v124
      %v522 = vadd.f32 %v520, %v521
      %523 = vst [vmem:[#allocation9] sm:$0xff] %v520
      %s524 = scalar_lea.vmem [#allocation4], 48
      %v525 = vld [vmem:[%s524] sm:$0xff]
      %v526 = vld [vmem:[%s524 + $0x8] sm:$0xff]
      %v527 = vld [vmem:[%s524 + $0x10] sm:$0xff]
      %v528 = vld [vmem:[%s524 + $0x18] sm:$0xff]
      %v529 = vld [vmem:[%s524 + $0x20] sm:$0xff]
      %v530 = vld [vmem:[%s524 + $0x28] sm:$0xff]
      %v531 = vpack.c.bf16 %v522, %v522
      %532 = vmatprep.subr.bf16.mxu0 %v262
      %533 = vmatpush1.bf16.msra.mxu0 %v261
      %534 = vmatprep.subr.bf16.mxu0 %v267
      %535 = vmatpush1.bf16.msra.mxu0 %v266
      %536 = vmatprep.subr.bf16.mxu0 %v272
      %537 = vmatpush1.bf16.msra.mxu0 %v271
      %538 = vmatprep.subr.bf16.mxu0 %v277
      %539 = vmatpush1.bf16.msra.mxu0 %v276
      %540 = vmatprep.subr.bf16.mxu0 %v282
      %541 = vmatpush1.bf16.msra.mxu0 %v281
      %542 = vmatprep.subr.bf16.mxu0 %v287
      %543 = vmatpush1.bf16.msra.mxu0 %v286
      %544 = vmatprep.subr.bf16.mxu0 %v292
      %545 = vmatpush1.bf16.msra.mxu0 %v291
      %546 = vmatprep.subr.bf16.mxu0 %v297
      %547 = vmatpush1.bf16.msra.mxu0 %v296
      %548 = vmatprep.subr.bf16.mxu0 0
      %549 = vmatpush1.bf16.msra.mxu0 0
      %550 = vmatprep.subr.bf16.mxu0 0
      %551 = vmatpush1.bf16.msra.mxu0 0
      %552 = vmatprep.subr.bf16.mxu0 0
      %553 = vmatpush1.bf16.msra.mxu0 0
      %554 = vmatprep.subr.bf16.mxu0 0
      %555 = vmatpush1.bf16.msra.mxu0 0
      %556 = vmatprep.subr.bf16.mxu0 0
      %557 = vmatpush1.bf16.msra.mxu0 0
      %558 = vmatprep.subr.bf16.mxu0 0
      %559 = vmatpush1.bf16.msra.mxu0 0
      %560 = vmatprep.subr.bf16.mxu0 0
      %561 = vmatpush1.bf16.msra.mxu0 0
      %562 = vmatprep.subr.bf16.mxu0 0
      %563 = vmatpush1.bf16.msra.mxu0 0
      %564 = vmatprep.mubr.bf16.mxu0 0
      %565 = vmatmul.mubr.bf16.gmra.mrb[0].mxu0 %v531
      %v566 = vpop.f32.mrb[0].mxu0
      %v567 = vadd.f32 0.0, %v566
      %v568 = vpop.f32.mrb[0].mxu0
      %v569 = vadd.f32 0.0, %v568
      %v570 = vpop.f32.mrb[0].mxu0
      %v571 = vpop.f32.mrb[0].mxu0
      %572 = vdwg.mxu0
      %573 = vmatprep.subr.bf16.mxu0 %v264
      %574 = vmatpush1.bf16.msra.mxu0 %v263
      %575 = vmatprep.subr.bf16.mxu0 %v269
      %576 = vmatpush1.bf16.msra.mxu0 %v268
      %577 = vmatprep.subr.bf16.mxu0 %v274
      %578 = vmatpush1.bf16.msra.mxu0 %v273
      %579 = vmatprep.subr.bf16.mxu0 %v279
      %580 = vmatpush1.bf16.msra.mxu0 %v278
      %581 = vmatprep.subr.bf16.mxu0 %v284
      %582 = vmatpush1.bf16.msra.mxu0 %v283
      %583 = vmatprep.subr.bf16.mxu0 %v289
      %584 = vmatpush1.bf16.msra.mxu0 %v288
      %585 = vmatprep.subr.bf16.mxu0 %v294
      %586 = vmatpush1.bf16.msra.mxu0 %v293
      %587 = vmatprep.subr.bf16.mxu0 %v299
      %588 = vmatpush1.bf16.msra.mxu0 %v298
      %589 = vmatprep.subr.bf16.mxu0 0
      %590 = vmatpush1.bf16.msra.mxu0 0
      %591 = vmatprep.subr.bf16.mxu0 0
      %592 = vmatpush1.bf16.msra.mxu0 0
      %593 = vmatprep.subr.bf16.mxu0 0
      %594 = vmatpush1.bf16.msra.mxu0 0
      %595 = vmatprep.subr.bf16.mxu0 0
      %596 = vmatpush1.bf16.msra.mxu0 0
      %597 = vmatprep.subr.bf16.mxu0 0
      %598 = vmatpush1.bf16.msra.mxu0 0
      %599 = vmatprep.subr.bf16.mxu0 0
      %600 = vmatpush1.bf16.msra.mxu0 0
      %601 = vmatprep.subr.bf16.mxu0 0
      %602 = vmatpush1.bf16.msra.mxu0 0
      %603 = vmatprep.subr.bf16.mxu0 0
      %604 = vmatpush1.bf16.msra.mxu0 0
      %605 = vmatprep.mubr.bf16.mxu0 0
      %606 = vmatmul.mubr.bf16.gmra.mrb[0].mxu0 %v531
      %v607 = vpop.f32.mrb[0].mxu0
      %v608 = vadd.f32 0.0, %v607
      %v609 = vpop.f32.mrb[0].mxu0
      %v610 = vadd.f32 0.0, %v609
      %v611 = vpop.f32.mrb[0].mxu0
      %v612 = vpop.f32.mrb[0].mxu0
      %613 = vdwg.mxu0
      %614 = vmatprep.subr.bf16.mxu0 0
      %615 = vmatpush1.bf16.msra.mxu0 %v265
      %616 = vmatprep.subr.bf16.mxu0 0
      %617 = vmatpush1.bf16.msra.mxu0 %v270
      %618 = vmatprep.subr.bf16.mxu0 0
      %619 = vmatpush1.bf16.msra.mxu0 %v275
      %620 = vmatprep.subr.bf16.mxu0 0
      %621 = vmatpush1.bf16.msra.mxu0 %v280
      %622 = vmatprep.subr.bf16.mxu0 0
      %623 = vmatpush1.bf16.msra.mxu0 %v285
      %624 = vmatprep.subr.bf16.mxu0 0
      %625 = vmatpush1.bf16.msra.mxu0 %v290
      %626 = vmatprep.subr.bf16.mxu0 0
      %627 = vmatpush1.bf16.msra.mxu0 %v295
      %628 = vmatprep.subr.bf16.mxu0 0
      %629 = vmatpush1.bf16.msra.mxu0 %v300
      %630 = vmatprep.subr.bf16.mxu0 0
      %631 = vmatpush1.bf16.msra.mxu0 0
      %632 = vmatprep.subr.bf16.mxu0 0
      %633 = vmatpush1.bf16.msra.mxu0 0
      %634 = vmatprep.subr.bf16.mxu0 0
      %635 = vmatpush1.bf16.msra.mxu0 0
      %636 = vmatprep.subr.bf16.mxu0 0
      %637 = vmatpush1.bf16.msra.mxu0 0
      %638 = vmatprep.subr.bf16.mxu0 0
      %639 = vmatpush1.bf16.msra.mxu0 0
      %640 = vmatprep.subr.bf16.mxu0 0
      %641 = vmatpush1.bf16.msra.mxu0 0
      %642 = vmatprep.subr.bf16.mxu0 0
      %643 = vmatpush1.bf16.msra.mxu0 0
      %644 = vmatprep.subr.bf16.mxu0 0
      %645 = vmatpush1.bf16.msra.mxu0 0
      %646 = vmatprep.mubr.bf16.mxu0 0
      %647 = vmatmul.mubr.bf16.gmra.mrb[0].mxu0 %v531
      %v648 = vpop.f32.mrb[0].mxu0
      %v649 = vadd.f32 0.0, %v648
      %v650 = vpop.f32.mrb[0].mxu0
      %v651 = vpop.f32.mrb[0].mxu0
      %v652 = vpop.f32.mrb[0].mxu0
      %653 = vdwg.mxu0
      %v654 = vadd.f32 %v525, %v567
      %v655 = vadd.f32 %v526, %v569
      %v656 = vadd.f32 %v527, %v608
      %v657 = vadd.f32 %v528, %v610
      %v658 = vadd.f32 %v529, %v649
      %v659 = vxor.u32 %v654, 2147483648
      %v660 = vxor.u32 %v655, 2147483648
      %v661 = vxor.u32 %v656, 2147483648
      %v662 = vxor.u32 %v657, 2147483648
      %v663 = vmul.f32 %v659, 1.442695
      %v664 = vpow.pop %v663
      %v665 = vmul.f32 %v660, 1.442695
      %v666 = vpow.pop %v665
      %v667 = vmul.f32 %v661, 1.442695
      %v668 = vpow.pop %v667
      %v669 = vmul.f32 %v662, 1.442695
      %v670 = vpow.pop %v669
      %v671 = vadd.f32 %v664, 1.0
      %v672 = vadd.f32 %v666, 1.0
      %v673 = vadd.f32 %v668, 1.0
      %v674 = vadd.f32 %v670, 1.0
      %v675 = vrcp.pop %v671
      %v676 = vmul.f32 1.0, %v675
      %v677 = vrcp.pop %v672
      %v678 = vmul.f32 1.0, %v677
      %v679 = vrcp.pop %v673
      %v680 = vmul.f32 1.0, %v679
      %v681 = vrcp.pop %v674
      %v682 = vmul.f32 1.0, %v681
      %v683 = vtanh.pop %v658
      %v684 = vmul.f32 %v676, %v683
      %v685 = vmul.f32 %v678, %v519
      %v686 = vadd.f32 %v684, %v685
      %v687 = vtanh.pop %v686
      %v688 = vmul.f32 %v680, %v687
      %v689 = vmul.f32 %v682, %v688
      %v690 = vsub.f32 1.0, %v682
      %v691 = vmul.f32 %v690, %v530
      %v692 = vadd.f32 %v689, %v691
      %s693 = sadd.s32 %s56, 1
      %v694 = vstv %s693
      %vm695 = vcmp.lt.s32.totalorder %v694, %v123
      %v696 = vsel %vm695, 1, 0
      %v697 = vcvt.s32.f32 %v696
      %699 = vset.pattern.permute.xlu0 0
      %700 = vperm.xlu0 %699, %v697
      %v701 = vpop.permute.xlu0 %700
      %v703 = vmul.f32 %v701, %v686
      %v704 = vsub.f32 1.0, %v697
      %706 = vset.pattern.permute.xlu0 0
      %707 = vperm.xlu0 %706, %v704
      %v708 = vpop.permute.xlu0 %707
      %v710 = vmul.f32 %v708, %v519
      %v711 = vadd.f32 %v703, %v710
      %v712 = vmul.f32 %v701, %v692
      %v713 = vmul.f32 %v708, %v522
      %v714 = vadd.f32 %v712, %v713
      %s715 = scalar_lea.vmem [#allocation9], 8
      %716 = vst [vmem:[%s715] sm:$0xff] %v712
      %s717 = scalar_lea.vmem [#allocation4], 96
      %v718 = vld [vmem:[%s717] sm:$0xff]
      %v719 = vld [vmem:[%s717 + $0x8] sm:$0xff]
      %v720 = vld [vmem:[%s717 + $0x10] sm:$0xff]
      %v721 = vld [vmem:[%s717 + $0x18] sm:$0xff]
      %v722 = vld [vmem:[%s717 + $0x20] sm:$0xff]
      %v723 = vld [vmem:[%s717 + $0x28] sm:$0xff]
      %v724 = vpack.c.bf16 %v714, %v714
      %725 = vmatprep.subr.bf16.mxu0 %v262
      %726 = vmatpush1.bf16.msra.mxu0 %v261
      %727 = vmatprep.subr.bf16.mxu0 %v267
      %728 = vmatpush1.bf16.msra.mxu0 %v266
      %729 = vmatprep.subr.bf16.mxu0 %v272
      %730 = vmatpush1.bf16.msra.mxu0 %v271
      %731 = vmatprep.subr.bf16.mxu0 %v277
      %732 = vmatpush1.bf16.msra.mxu0 %v276
      %733 = vmatprep.subr.bf16.mxu0 %v282
      %734 = vmatpush1.bf16.msra.mxu0 %v281
      %735 = vmatprep.subr.bf16.mxu0 %v287
      %736 = vmatpush1.bf16.msra.mxu0 %v286
      %737 = vmatprep.subr.bf16.mxu0 %v292
      %738 = vmatpush1.bf16.msra.mxu0 %v291
      %739 = vmatprep.subr.bf16.mxu0 %v297
      %740 = vmatpush1.bf16.msra.mxu0 %v296
      %741 = vmatprep.subr.bf16.mxu0 0
      %742 = vmatpush1.bf16.msra.mxu0 0
      %743 = vmatprep.subr.bf16.mxu0 0
      %744 = vmatpush1.bf16.msra.mxu0 0
      %745 = vmatprep.subr.bf16.mxu0 0
      %746 = vmatpush1.bf16.msra.mxu0 0
      %747 = vmatprep.subr.bf16.mxu0 0
      %748 = vmatpush1.bf16.msra.mxu0 0
      %749 = vmatprep.subr.bf16.mxu0 0
      %750 = vmatpush1.bf16.msra.mxu0 0
      %751 = vmatprep.subr.bf16.mxu0 0
      %752 = vmatpush1.bf16.msra.mxu0 0
      %753 = vmatprep.subr.bf16.mxu0 0
      %754 = vmatpush1.bf16.msra.mxu0 0
      %755 = vmatprep.subr.bf16.mxu0 0
      %756 = vmatpush1.bf16.msra.mxu0 0
      %757 = vmatprep.mubr.bf16.mxu0 0
      %758 = vmatmul.mubr.bf16.gmra.mrb[0].mxu0 %v724
      %v759 = vpop.f32.mrb[0].mxu0
      %v760 = vadd.f32 0.0, %v759
      %v761 = vpop.f32.mrb[0].mxu0
      %v762 = vadd.f32 0.0, %v761
      %v763 = vpop.f32.mrb[0].mxu0
      %v764 = vpop.f32.mrb[0].mxu0
      %765 = vdwg.mxu0
      %766 = vmatprep.subr.bf16.mxu0 %v264
      %767 = vmatpush1.bf16.msra.mxu0 %v263
      %768 = vmatprep.subr.bf16.mxu0 %v269
      %769 = vmatpush1.bf16.msra.mxu0 %v268
      %770 = vmatprep.subr.bf16.mxu0 %v274
      %771 = vmatpush1.bf16.msra.mxu0 %v273
      %772 = vmatprep.subr.bf16.mxu0 %v279
      %773 = vmatpush1.bf16.msra.mxu0 %v278
      %774 = vmatprep.subr.bf16.mxu0 %v284
      %775 = vmatpush1.bf16.msra.mxu0 %v283
      %776 = vmatprep.subr.bf16.mxu0 %v289
      %777 = vmatpush1.bf16.msra.mxu0 %v288
      %778 = vmatprep.subr.bf16.mxu0 %v294
      %779 = vmatpush1.bf16.msra.mxu0 %v293
      %780 = vmatprep.subr.bf16.mxu0 %v299
      %781 = vmatpush1.bf16.msra.mxu0 %v298
      %782 = vmatprep.subr.bf16.mxu0 0
      %783 = vmatpush1.bf16.msra.mxu0 0
      %784 = vmatprep.subr.bf16.mxu0 0
      %785 = vmatpush1.bf16.msra.mxu0 0
      %786 = vmatprep.subr.bf16.mxu0 0
      %787 = vmatpush1.bf16.msra.mxu0 0
      %788 = vmatprep.subr.bf16.mxu0 0
      %789 = vmatpush1.bf16.msra.mxu0 0
      %790 = vmatprep.subr.bf16.mxu0 0
      %791 = vmatpush1.bf16.msra.mxu0 0
      %792 = vmatprep.subr.bf16.mxu0 0
      %793 = vmatpush1.bf16.msra.mxu0 0
      %794 = vmatprep.subr.bf16.mxu0 0
      %795 = vmatpush1.bf16.msra.mxu0 0
      %796 = vmatprep.subr.bf16.mxu0 0
      %797 = vmatpush1.bf16.msra.mxu0 0
      %798 = vmatprep.mubr.bf16.mxu0 0
      %799 = vmatmul.mubr.bf16.gmra.mrb[0].mxu0 %v724
      %v800 = vpop.f32.mrb[0].mxu0
      %v801 = vadd.f32 0.0, %v800
      %v802 = vpop.f32.mrb[0].mxu0
      %v803 = vadd.f32 0.0, %v802
      %v804 = vpop.f32.mrb[0].mxu0
      %v805 = vpop.f32.mrb[0].mxu0
      %806 = vdwg.mxu0
      %807 = vmatprep.subr.bf16.mxu0 0
      %808 = vmatpush1.bf16.msra.mxu0 %v265
      %809 = vmatprep.subr.bf16.mxu0 0
      %810 = vmatpush1.bf16.msra.mxu0 %v270
      %811 = vmatprep.subr.bf16.mxu0 0
      %812 = vmatpush1.bf16.msra.mxu0 %v275
      %813 = vmatprep.subr.bf16.mxu0 0
      %814 = vmatpush1.bf16.msra.mxu0 %v280
      %815 = vmatprep.subr.bf16.mxu0 0
      %816 = vmatpush1.bf16.msra.mxu0 %v285
      %817 = vmatprep.subr.bf16.mxu0 0
      %818 = vmatpush1.bf16.msra.mxu0 %v290
      %819 = vmatprep.subr.bf16.mxu0 0
      %820 = vmatpush1.bf16.msra.mxu0 %v295
      %821 = vmatprep.subr.bf16.mxu0 0
      %822 = vmatpush1.bf16.msra.mxu0 %v300
      %823 = vmatprep.subr.bf16.mxu0 0
      %824 = vmatpush1.bf16.msra.mxu0 0
      %825 = vmatprep.subr.bf16.mxu0 0
      %826 = vmatpush1.bf16.msra.mxu0 0
      %827 = vmatprep.subr.bf16.mxu0 0
      %828 = vmatpush1.bf16.msra.mxu0 0
      %829 = vmatprep.subr.bf16.mxu0 0
      %830 = vmatpush1.bf16.msra.mxu0 0
      %831 = vmatprep.subr.bf16.mxu0 0
      %832 = vmatpush1.bf16.msra.mxu0 0
      %833 = vmatprep.subr.bf16.mxu0 0
      %834 = vmatpush1.bf16.msra.mxu0 0
      %835 = vmatprep.subr.bf16.mxu0 0
      %836 = vmatpush1.bf16.msra.mxu0 0
      %837 = vmatprep.subr.bf16.mxu0 0
      %838 = vmatpush1.bf16.msra.mxu0 0
      %839 = vmatprep.mubr.bf16.mxu0 0
      %840 = vmatmul.mubr.bf16.gmra.mrb[0].mxu0 %v724
      %v841 = vpop.f32.mrb[0].mxu0
      %v842 = vadd.f32 0.0, %v841
      %v843 = vpop.f32.mrb[0].mxu0
      %v844 = vpop.f32.mrb[0].mxu0
      %v845 = vpop.f32.mrb[0].mxu0
      %846 = vdwg.mxu0
      %v847 = vadd.f32 %v718, %v760
      %v848 = vadd.f32 %v719, %v762
      %v849 = vadd.f32 %v720, %v801
      %v850 = vadd.f32 %v721, %v803
      %v851 = vadd.f32 %v722, %v842
      %v852 = vxor.u32 %v847, 2147483648
      %v853 = vxor.u32 %v848, 2147483648
      %v854 = vxor.u32 %v849, 2147483648
      %v855 = vxor.u32 %v850, 2147483648
      %v856 = vmul.f32 %v852, 1.442695
      %v857 = vpow.pop %v856
      %v858 = vmul.f32 %v853, 1.442695
      %v859 = vpow.pop %v858
      %v860 = vmul.f32 %v854, 1.442695
      %v861 = vpow.pop %v860
      %v862 = vmul.f32 %v855, 1.442695
      %v863 = vpow.pop %v862
      %v864 = vadd.f32 %v857, 1.0
      %v865 = vadd.f32 %v859, 1.0
      %v866 = vadd.f32 %v861, 1.0
      %v867 = vadd.f32 %v863, 1.0
      %v868 = vrcp.pop %v864
      %v869 = vmul.f32 1.0, %v868
      %v870 = vrcp.pop %v865
      %v871 = vmul.f32 1.0, %v870
      %v872 = vrcp.pop %v866
      %v873 = vmul.f32 1.0, %v872
      %v874 = vrcp.pop %v867
      %v875 = vmul.f32 1.0, %v874
      %v876 = vtanh.pop %v851
      %v877 = vmul.f32 %v869, %v876
      %v878 = vmul.f32 %v871, %v711
      %v879 = vadd.f32 %v877, %v878
      %v880 = vtanh.pop %v879
      %v881 = vmul.f32 %v873, %v880
      %v882 = vmul.f32 %v875, %v881
      %v883 = vsub.f32 1.0, %v875
      %v884 = vmul.f32 %v883, %v723
      %v885 = vadd.f32 %v882, %v884
      %s886 = sadd.s32 %s56, 2
      %v887 = vstv %s886
      %vm888 = vcmp.lt.s32.totalorder %v887, %v123
      %v889 = vsel %vm888, 1, 0
      %v890 = vcvt.s32.f32 %v889
      %892 = vset.pattern.permute.xlu0 0
      %893 = vperm.xlu0 %892, %v890
      %v894 = vpop.permute.xlu0 %893
      %v896 = vmul.f32 %v894, %v879
      %v897 = vsub.f32 1.0, %v890
      %899 = vset.pattern.permute.xlu0 0
      %900 = vperm.xlu0 %899, %v897
      %v901 = vpop.permute.xlu0 %900
      %v903 = vmul.f32 %v901, %v711
      %v904 = vadd.f32 %v896, %v903
      %v905 = vmul.f32 %v894, %v885
      %v906 = vmul.f32 %v901, %v714
      %v907 = vadd.f32 %v905, %v906
      %s908 = scalar_lea.vmem [#allocation9], 16
      %909 = vst [vmem:[%s908] sm:$0xff] %v905
      %s910 = scalar_lea.vmem [#allocation4], 144
      %v911 = vld [vmem:[%s910] sm:$0xff]
      %v912 = vld [vmem:[%s910 + $0x8] sm:$0xff]
      %v913 = vld [vmem:[%s910 + $0x10] sm:$0xff]
      %v914 = vld [vmem:[%s910 + $0x18] sm:$0xff]
      %v915 = vld [vmem:[%s910 + $0x20] sm:$0xff]
      %v916 = vld [vmem:[%s910 + $0x28] sm:$0xff]
      %v917 = vpack.c.bf16 %v907, %v907
      %918 = vmatprep.subr.bf16.mxu0 %v262
      %919 = vmatpush1.bf16.msra.mxu0 %v261
      %920 = vmatprep.subr.bf16.mxu0 %v267
      %921 = vmatpush1.bf16.msra.mxu0 %v266
      %922 = vmatprep.subr.bf16.mxu0 %v272
      %923 = vmatpush1.bf16.msra.mxu0 %v271
      %924 = vmatprep.subr.bf16.mxu0 %v277
      %925 = vmatpush1.bf16.msra.mxu0 %v276
      %926 = vmatprep.subr.bf16.mxu0 %v282
      %927 = vmatpush1.bf16.msra.mxu0 %v281
      %928 = vmatprep.subr.bf16.mxu0 %v287
      %929 = vmatpush1.bf16.msra.mxu0 %v286
      %930 = vmatprep.subr.bf16.mxu0 %v292
      %931 = vmatpush1.bf16.msra.mxu0 %v291
      %932 = vmatprep.subr.bf16.mxu0 %v297
      %933 = vmatpush1.bf16.msra.mxu0 %v296
      %934 = vmatprep.subr.bf16.mxu0 0
      %935 = vmatpush1.bf16.msra.mxu0 0
      %936 = vmatprep.subr.bf16.mxu0 0
      %937 = vmatpush1.bf16.msra.mxu0 0
      %938 = vmatprep.subr.bf16.mxu0 0
      %939 = vmatpush1.bf16.msra.mxu0 0
      %940 = vmatprep.subr.bf16.mxu0 0
      %941 = vmatpush1.bf16.msra.mxu0 0
      %942 = vmatprep.subr.bf16.mxu0 0
      %943 = vmatpush1.bf16.msra.mxu0 0
      %944 = vmatprep.subr.bf16.mxu0 0
      %945 = vmatpush1.bf16.msra.mxu0 0
      %946 = vmatprep.subr.bf16.mxu0 0
      %947 = vmatpush1.bf16.msra.mxu0 0
      %948 = vmatprep.subr.bf16.mxu0 0
      %949 = vmatpush1.bf16.msra.mxu0 0
      %950 = vmatprep.mubr.bf16.mxu0 0
      %951 = vmatmul.mubr.bf16.gmra.mrb[0].mxu0 %v917
      %v952 = vpop.f32.mrb[0].mxu0
      %v953 = vadd.f32 0.0, %v952
      %v954 = vpop.f32.mrb[0].mxu0
      %v955 = vadd.f32 0.0, %v954
      %v956 = vpop.f32.mrb[0].mxu0
      %v957 = vpop.f32.mrb[0].mxu0
      %958 = vdwg.mxu0
      %959 = vmatprep.subr.bf16.mxu0 %v264
      %960 = vmatpush1.bf16.msra.mxu0 %v263
      %961 = vmatprep.subr.bf16.mxu0 %v269
      %962 = vmatpush1.bf16.msra.mxu0 %v268
      %963 = vmatprep.subr.bf16.mxu0 %v274
      %964 = vmatpush1.bf16.msra.mxu0 %v273
      %965 = vmatprep.subr.bf16.mxu0 %v279
      %966 = vmatpush1.bf16.msra.mxu0 %v278
      %967 = vmatprep.subr.bf16.mxu0 %v284
      %968 = vmatpush1.bf16.msra.mxu0 %v283
      %969 = vmatprep.subr.bf16.mxu0 %v289
      %970 = vmatpush1.bf16.msra.mxu0 %v288
      %971 = vmatprep.subr.bf16.mxu0 %v294
      %972 = vmatpush1.bf16.msra.mxu0 %v293
      %973 = vmatprep.subr.bf16.mxu0 %v299
      %974 = vmatpush1.bf16.msra.mxu0 %v298
      %975 = vmatprep.subr.bf16.mxu0 0
      %976 = vmatpush1.bf16.msra.mxu0 0
      %977 = vmatprep.subr.bf16.mxu0 0
      %978 = vmatpush1.bf16.msra.mxu0 0
      %979 = vmatprep.subr.bf16.mxu0 0
      %980 = vmatpush1.bf16.msra.mxu0 0
      %981 = vmatprep.subr.bf16.mxu0 0
      %982 = vmatpush1.bf16.msra.mxu0 0
      %983 = vmatprep.subr.bf16.mxu0 0
      %984 = vmatpush1.bf16.msra.mxu0 0
      %985 = vmatprep.subr.bf16.mxu0 0
      %986 = vmatpush1.bf16.msra.mxu0 0
      %987 = vmatprep.subr.bf16.mxu0 0
      %988 = vmatpush1.bf16.msra.mxu0 0
      %989 = vmatprep.subr.bf16.mxu0 0
      %990 = vmatpush1.bf16.msra.mxu0 0
      %991 = vmatprep.mubr.bf16.mxu0 0
      %992 = vmatmul.mubr.bf16.gmra.mrb[0].mxu0 %v917
      %v993 = vpop.f32.mrb[0].mxu0
      %v994 = vadd.f32 0.0, %v993
      %v995 = vpop.f32.mrb[0].mxu0
      %v996 = vadd.f32 0.0, %v995
      %v997 = vpop.f32.mrb[0].mxu0
      %v998 = vpop.f32.mrb[0].mxu0
      %999 = vdwg.mxu0
      %1000 = vmatprep.subr.bf16.mxu0 0
      %1001 = vmatpush1.bf16.msra.mxu0 %v265
      %1002 = vmatprep.subr.bf16.mxu0 0
      %1003 = vmatpush1.bf16.msra.mxu0 %v270
      %1004 = vmatprep.subr.bf16.mxu0 0
      %1005 = vmatpush1.bf16.msra.mxu0 %v275
      %1006 = vmatprep.subr.bf16.mxu0 0
      %1007 = vmatpush1.bf16.msra.mxu0 %v280
      %1008 = vmatprep.subr.bf16.mxu0 0
      %1009 = vmatpush1.bf16.msra.mxu0 %v285
      %1010 = vmatprep.subr.bf16.mxu0 0
      %1011 = vmatpush1.bf16.msra.mxu0 %v290
      %1012 = vmatprep.subr.bf16.mxu0 0
      %1013 = vmatpush1.bf16.msra.mxu0 %v295
      %1014 = vmatprep.subr.bf16.mxu0 0
      %1015 = vmatpush1.bf16.msra.mxu0 %v300
      %1016 = vmatprep.subr.bf16.mxu0 0
      %1017 = vmatpush1.bf16.msra.mxu0 0
      %1018 = vmatprep.subr.bf16.mxu0 0
      %1019 = vmatpush1.bf16.msra.mxu0 0
      %1020 = vmatprep.subr.bf16.mxu0 0
      %1021 = vmatpush1.bf16.msra.mxu0 0
      %1022 = vmatprep.subr.bf16.mxu0 0
      %1023 = vmatpush1.bf16.msra.mxu0 0
      %1024 = vmatprep.subr.bf16.mxu0 0
      %1025 = vmatpush1.bf16.msra.mxu0 0
      %1026 = vmatprep.subr.bf16.mxu0 0
      %1027 = vmatpush1.bf16.msra.mxu0 0
      %1028 = vmatprep.subr.bf16.mxu0 0
      %1029 = vmatpush1.bf16.msra.mxu0 0
      %1030 = vmatprep.subr.bf16.mxu0 0
      %1031 = vmatpush1.bf16.msra.mxu0 0
      %1032 = vmatprep.mubr.bf16.mxu0 0
      %1033 = vmatmul.mubr.bf16.gmra.mrb[0].mxu0 %v917
      %v1034 = vpop.f32.mrb[0].mxu0
      %v1035 = vadd.f32 0.0, %v1034
      %v1036 = vpop.f32.mrb[0].mxu0
      %v1037 = vpop.f32.mrb[0].mxu0
      %v1038 = vpop.f32.mrb[0].mxu0
      %1039 = vdwg.mxu0
      %v1040 = vadd.f32 %v911, %v953
      %v1041 = vadd.f32 %v912, %v955
      %v1042 = vadd.f32 %v913, %v994
      %v1043 = vadd.f32 %v914, %v996
      %v1044 = vadd.f32 %v915, %v1035
      %v1045 = vxor.u32 %v1040, 2147483648
      %v1046 = vxor.u32 %v1041, 2147483648
      %v1047 = vxor.u32 %v1042, 2147483648
      %v1048 = vxor.u32 %v1043, 2147483648
      %v1049 = vmul.f32 %v1045, 1.442695
      %v1050 = vpow.pop %v1049
      %v1051 = vmul.f32 %v1046, 1.442695
      %v1052 = vpow.pop %v1051
      %v1053 = vmul.f32 %v1047, 1.442695
      %v1054 = vpow.pop %v1053
      %v1055 = vmul.f32 %v1048, 1.442695
      %v1056 = vpow.pop %v1055
      %v1057 = vadd.f32 %v1050, 1.0
      %v1058 = vadd.f32 %v1052, 1.0
      %v1059 = vadd.f32 %v1054, 1.0
      %v1060 = vadd.f32 %v1056, 1.0
      %v1061 = vrcp.pop %v1057
      %v1062 = vmul.f32 1.0, %v1061
      %v1063 = vrcp.pop %v1058
      %v1064 = vmul.f32 1.0, %v1063
      %v1065 = vrcp.pop %v1059
      %v1066 = vmul.f32 1.0, %v1065
      %v1067 = vrcp.pop %v1060
      %v1068 = vmul.f32 1.0, %v1067
      %v1069 = vtanh.pop %v1044
      %v1070 = vmul.f32 %v1062, %v1069
      %v1071 = vmul.f32 %v1064, %v904
      %v1072 = vadd.f32 %v1070, %v1071
      %v1073 = vtanh.pop %v1072
      %v1074 = vmul.f32 %v1066, %v1073
      %v1075 = vmul.f32 %v1068, %v1074
      %v1076 = vsub.f32 1.0, %v1068
      %v1077 = vmul.f32 %v1076, %v916
      %v1078 = vadd.f32 %v1075, %v1077
      %s1079 = sadd.s32 %s56, 3
      %v1080 = vstv %s1079
      %vm1081 = vcmp.lt.s32.totalorder %v1080, %v123
      %v1082 = vsel %vm1081, 1, 0
      %v1083 = vcvt.s32.f32 %v1082
      %1085 = vset.pattern.permute.xlu0 0
      %1086 = vperm.xlu0 %1085, %v1083
      %v1087 = vpop.permute.xlu0 %1086
      %v1089 = vmul.f32 %v1087, %v1072
      %v1090 = vsub.f32 1.0, %v1083
      %1092 = vset.pattern.permute.xlu0 0
      %1093 = vperm.xlu0 %1092, %v1090
      %v1094 = vpop.permute.xlu0 %1093
      %v1096 = vmul.f32 %v1094, %v904
      %v1097 = vadd.f32 %v1089, %v1096
      %v1098 = vmul.f32 %v1087, %v1078
      %v1099 = vmul.f32 %v1094, %v907
      %v1100 = vadd.f32 %v1098, %v1099
      %s1101 = scalar_lea.vmem [#allocation9], 24
      %1102 = vst [vmem:[%s1101] sm:$0xff] %v1098
      %s1103 = scalar_lea.vmem [#allocation4], 192
      %v1104 = vld [vmem:[%s1103] sm:$0xff]
      %v1105 = vld [vmem:[%s1103 + $0x8] sm:$0xff]
      %v1106 = vld [vmem:[%s1103 + $0x10] sm:$0xff]
      %v1107 = vld [vmem:[%s1103 + $0x18] sm:$0xff]
      %v1108 = vld [vmem:[%s1103 + $0x20] sm:$0xff]
      %v1109 = vld [vmem:[%s1103 + $0x28] sm:$0xff]
      %v1110 = vpack.c.bf16 %v1100, %v1100
      %1111 = vmatprep.subr.bf16.mxu0 %v262
      %1112 = vmatpush1.bf16.msra.mxu0 %v261
      %1113 = vmatprep.subr.bf16.mxu0 %v267
      %1114 = vmatpush1.bf16.msra.mxu0 %v266
      %1115 = vmatprep.subr.bf16.mxu0 %v272
      %1116 = vmatpush1.bf16.msra.mxu0 %v271
      %1117 = vmatprep.subr.bf16.mxu0 %v277
      %1118 = vmatpush1.bf16.msra.mxu0 %v276
      %1119 = vmatprep.subr.bf16.mxu0 %v282
      %1120 = vmatpush1.bf16.msra.mxu0 %v281
      %1121 = vmatprep.subr.bf16.mxu0 %v287
      %1122 = vmatpush1.bf16.msra.mxu0 %v286
      %1123 = vmatprep.subr.bf16.mxu0 %v292
      %1124 = vmatpush1.bf16.msra.mxu0 %v291
      %1125 = vmatprep.subr.bf16.mxu0 %v297
      %1126 = vmatpush1.bf16.msra.mxu0 %v296
      %1127 = vmatprep.subr.bf16.mxu0 0
      %1128 = vmatpush1.bf16.msra.mxu0 0
      %1129 = vmatprep.subr.bf16.mxu0 0
      %1130 = vmatpush1.bf16.msra.mxu0 0
      %1131 = vmatprep.subr.bf16.mxu0 0
      %1132 = vmatpush1.bf16.msra.mxu0 0
      %1133 = vmatprep.subr.bf16.mxu0 0
      %1134 = vmatpush1.bf16.msra.mxu0 0
      %1135 = vmatprep.subr.bf16.mxu0 0
      %1136 = vmatpush1.bf16.msra.mxu0 0
      %1137 = vmatprep.subr.bf16.mxu0 0
      %1138 = vmatpush1.bf16.msra.mxu0 0
      %1139 = vmatprep.subr.bf16.mxu0 0
      %1140 = vmatpush1.bf16.msra.mxu0 0
      %1141 = vmatprep.subr.bf16.mxu0 0
      %1142 = vmatpush1.bf16.msra.mxu0 0
      %1143 = vmatprep.mubr.bf16.mxu0 0
      %1144 = vmatmul.mubr.bf16.gmra.mrb[0].mxu0 %v1110
      %v1145 = vpop.f32.mrb[0].mxu0
      %v1146 = vadd.f32 0.0, %v1145
      %v1147 = vpop.f32.mrb[0].mxu0
      %v1148 = vadd.f32 0.0, %v1147
      %v1149 = vpop.f32.mrb[0].mxu0
      %v1150 = vpop.f32.mrb[0].mxu0
      %1151 = vdwg.mxu0
      %1152 = vmatprep.subr.bf16.mxu0 %v264
      %1153 = vmatpush1.bf16.msra.mxu0 %v263
      %1154 = vmatprep.subr.bf16.mxu0 %v269
      %1155 = vmatpush1.bf16.msra.mxu0 %v268
      %1156 = vmatprep.subr.bf16.mxu0 %v274
      %1157 = vmatpush1.bf16.msra.mxu0 %v273
      %1158 = vmatprep.subr.bf16.mxu0 %v279
      %1159 = vmatpush1.bf16.msra.mxu0 %v278
      %1160 = vmatprep.subr.bf16.mxu0 %v284
      %1161 = vmatpush1.bf16.msra.mxu0 %v283
      %1162 = vmatprep.subr.bf16.mxu0 %v289
      %1163 = vmatpush1.bf16.msra.mxu0 %v288
      %1164 = vmatprep.subr.bf16.mxu0 %v294
      %1165 = vmatpush1.bf16.msra.mxu0 %v293
      %1166 = vmatprep.subr.bf16.mxu0 %v299
      %1167 = vmatpush1.bf16.msra.mxu0 %v298
      %1168 = vmatprep.subr.bf16.mxu0 0
      %1169 = vmatpush1.bf16.msra.mxu0 0
      %1170 = vmatprep.subr.bf16.mxu0 0
      %1171 = vmatpush1.bf16.msra.mxu0 0
      %1172 = vmatprep.subr.bf16.mxu0 0
      %1173 = vmatpush1.bf16.msra.mxu0 0
      %1174 = vmatprep.subr.bf16.mxu0 0
      %1175 = vmatpush1.bf16.msra.mxu0 0
      %1176 = vmatprep.subr.bf16.mxu0 0
      %1177 = vmatpush1.bf16.msra.mxu0 0
      %1178 = vmatprep.subr.bf16.mxu0 0
      %1179 = vmatpush1.bf16.msra.mxu0 0
      %1180 = vmatprep.subr.bf16.mxu0 0
      %1181 = vmatpush1.bf16.msra.mxu0 0
      %1182 = vmatprep.subr.bf16.mxu0 0
      %1183 = vmatpush1.bf16.msra.mxu0 0
      %1184 = vmatprep.mubr.bf16.mxu0 0
      %1185 = vmatmul.mubr.bf16.gmra.mrb[0].mxu0 %v1110
      %v1186 = vpop.f32.mrb[0].mxu0
      %v1187 = vadd.f32 0.0, %v1186
      %v1188 = vpop.f32.mrb[0].mxu0
      %v1189 = vadd.f32 0.0, %v1188
      %v1190 = vpop.f32.mrb[0].mxu0
      %v1191 = vpop.f32.mrb[0].mxu0
      %1192 = vdwg.mxu0
      %1193 = vmatprep.subr.bf16.mxu0 0
      %1194 = vmatpush1.bf16.msra.mxu0 %v265
      %1195 = vmatprep.subr.bf16.mxu0 0
      %1196 = vmatpush1.bf16.msra.mxu0 %v270
      %1197 = vmatprep.subr.bf16.mxu0 0
      %1198 = vmatpush1.bf16.msra.mxu0 %v275
      %1199 = vmatprep.subr.bf16.mxu0 0
      %1200 = vmatpush1.bf16.msra.mxu0 %v280
      %1201 = vmatprep.subr.bf16.mxu0 0
      %1202 = vmatpush1.bf16.msra.mxu0 %v285
      %1203 = vmatprep.subr.bf16.mxu0 0
      %1204 = vmatpush1.bf16.msra.mxu0 %v290
      %1205 = vmatprep.subr.bf16.mxu0 0
      %1206 = vmatpush1.bf16.msra.mxu0 %v295
      %1207 = vmatprep.subr.bf16.mxu0 0
      %1208 = vmatpush1.bf16.msra.mxu0 %v300
      %1209 = vmatprep.subr.bf16.mxu0 0
      %1210 = vmatpush1.bf16.msra.mxu0 0
      %1211 = vmatprep.subr.bf16.mxu0 0
      %1212 = vmatpush1.bf16.msra.mxu0 0
      %1213 = vmatprep.subr.bf16.mxu0 0
      %1214 = vmatpush1.bf16.msra.mxu0 0
      %1215 = vmatprep.subr.bf16.mxu0 0
      %1216 = vmatpush1.bf16.msra.mxu0 0
      %1217 = vmatprep.subr.bf16.mxu0 0
      %1218 = vmatpush1.bf16.msra.mxu0 0
      %1219 = vmatprep.subr.bf16.mxu0 0
      %1220 = vmatpush1.bf16.msra.mxu0 0
      %1221 = vmatprep.subr.bf16.mxu0 0
      %1222 = vmatpush1.bf16.msra.mxu0 0
      %1223 = vmatprep.subr.bf16.mxu0 0
      %1224 = vmatpush1.bf16.msra.mxu0 0
      %1225 = vmatprep.mubr.bf16.mxu0 0
      %1226 = vmatmul.mubr.bf16.gmra.mrb[0].mxu0 %v1110
      %v1227 = vpop.f32.mrb[0].mxu0
      %v1228 = vadd.f32 0.0, %v1227
      %v1229 = vpop.f32.mrb[0].mxu0
      %v1230 = vpop.f32.mrb[0].mxu0
      %v1231 = vpop.f32.mrb[0].mxu0
      %1232 = vdwg.mxu0
      %v1233 = vadd.f32 %v1104, %v1146
      %v1234 = vadd.f32 %v1105, %v1148
      %v1235 = vadd.f32 %v1106, %v1187
      %v1236 = vadd.f32 %v1107, %v1189
      %v1237 = vadd.f32 %v1108, %v1228
      %v1238 = vxor.u32 %v1233, 2147483648
      %v1239 = vxor.u32 %v1234, 2147483648
      %v1240 = vxor.u32 %v1235, 2147483648
      %v1241 = vxor.u32 %v1236, 2147483648
      %v1242 = vmul.f32 %v1238, 1.442695
      %v1243 = vpow.pop %v1242
      %v1244 = vmul.f32 %v1239, 1.442695
      %v1245 = vpow.pop %v1244
      %v1246 = vmul.f32 %v1240, 1.442695
      %v1247 = vpow.pop %v1246
      %v1248 = vmul.f32 %v1241, 1.442695
      %v1249 = vpow.pop %v1248
      %v1250 = vadd.f32 %v1243, 1.0
      %v1251 = vadd.f32 %v1245, 1.0
      %v1252 = vadd.f32 %v1247, 1.0
      %v1253 = vadd.f32 %v1249, 1.0
      %v1254 = vrcp.pop %v1250
      %v1255 = vmul.f32 1.0, %v1254
      %v1256 = vrcp.pop %v1251
      %v1257 = vmul.f32 1.0, %v1256
      %v1258 = vrcp.pop %v1252
      %v1259 = vmul.f32 1.0, %v1258
      %v1260 = vrcp.pop %v1253
      %v1261 = vmul.f32 1.0, %v1260
      %v1262 = vtanh.pop %v1237
      %v1263 = vmul.f32 %v1255, %v1262
      %v1264 = vmul.f32 %v1257, %v1097
      %v1265 = vadd.f32 %v1263, %v1264
      %v1266 = vtanh.pop %v1265
      %v1267 = vmul.f32 %v1259, %v1266
      %v1268 = vmul.f32 %v1261, %v1267
      %v1269 = vsub.f32 1.0, %v1261
      %v1270 = vmul.f32 %v1269, %v1109
      %v1271 = vadd.f32 %v1268, %v1270
      %s1272 = sadd.s32 %s56, 4
      %v1273 = vstv %s1272
      %vm1274 = vcmp.lt.s32.totalorder %v1273, %v123
      %v1275 = vsel %vm1274, 1, 0
      %v1276 = vcvt.s32.f32 %v1275
      %1278 = vset.pattern.permute.xlu0 0
      %1279 = vperm.xlu0 %1278, %v1276
      %v1280 = vpop.permute.xlu0 %1279
      %v1282 = vmul.f32 %v1280, %v1265
      %v1283 = vsub.f32 1.0, %v1276
      %1285 = vset.pattern.permute.xlu0 0
      %1286 = vperm.xlu0 %1285, %v1283
      %v1287 = vpop.permute.xlu0 %1286
      %v1289 = vmul.f32 %v1287, %v1097
      %v1290 = vadd.f32 %v1282, %v1289
      %v1291 = vmul.f32 %v1280, %v1271
      %v1292 = vmul.f32 %v1287, %v1100
      %v1293 = vadd.f32 %v1291, %v1292
      %s1294 = scalar_lea.vmem [#allocation9], 32
      %1295 = vst [vmem:[%s1294] sm:$0xff] %v1291
      %s1296 = scalar_lea.vmem [#allocation4], 240
      %v1297 = vld [vmem:[%s1296] sm:$0xff]
      %v1298 = vld [vmem:[%s1296 + $0x8] sm:$0xff]
      %v1299 = vld [vmem:[%s1296 + $0x10] sm:$0xff]
      %v1300 = vld [vmem:[%s1296 + $0x18] sm:$0xff]
      %v1301 = vld [vmem:[%s1296 + $0x20] sm:$0xff]
      %v1302 = vld [vmem:[%s1296 + $0x28] sm:$0xff]
      %v1303 = vpack.c.bf16 %v1293, %v1293
      %1304 = vmatprep.subr.bf16.mxu0 %v262
      %1305 = vmatpush1.bf16.msra.mxu0 %v261
      %1306 = vmatprep.subr.bf16.mxu0 %v267
      %1307 = vmatpush1.bf16.msra.mxu0 %v266
      %1308 = vmatprep.subr.bf16.mxu0 %v272
      %1309 = vmatpush1.bf16.msra.mxu0 %v271
      %1310 = vmatprep.subr.bf16.mxu0 %v277
      %1311 = vmatpush1.bf16.msra.mxu0 %v276
      %1312 = vmatprep.subr.bf16.mxu0 %v282
      %1313 = vmatpush1.bf16.msra.mxu0 %v281
      %1314 = vmatprep.subr.bf16.mxu0 %v287
      %1315 = vmatpush1.bf16.msra.mxu0 %v286
      %1316 = vmatprep.subr.bf16.mxu0 %v292
      %1317 = vmatpush1.bf16.msra.mxu0 %v291
      %1318 = vmatprep.subr.bf16.mxu0 %v297
      %1319 = vmatpush1.bf16.msra.mxu0 %v296
      %1320 = vmatprep.subr.bf16.mxu0 0
      %1321 = vmatpush1.bf16.msra.mxu0 0
      %1322 = vmatprep.subr.bf16.mxu0 0
      %1323 = vmatpush1.bf16.msra.mxu0 0
      %1324 = vmatprep.subr.bf16.mxu0 0
      %1325 = vmatpush1.bf16.msra.mxu0 0
      %1326 = vmatprep.subr.bf16.mxu0 0
      %1327 = vmatpush1.bf16.msra.mxu0 0
      %1328 = vmatprep.subr.bf16.mxu0 0
      %1329 = vmatpush1.bf16.msra.mxu0 0
      %1330 = vmatprep.subr.bf16.mxu0 0
      %1331 = vmatpush1.bf16.msra.mxu0 0
      %1332 = vmatprep.subr.bf16.mxu0 0
      %1333 = vmatpush1.bf16.msra.mxu0 0
      %1334 = vmatprep.subr.bf16.mxu0 0
      %1335 = vmatpush1.bf16.msra.mxu0 0
      %1336 = vmatprep.mubr.bf16.mxu0 0
      %1337 = vmatmul.mubr.bf16.gmra.mrb[0].mxu0 %v1303
      %v1338 = vpop.f32.mrb[0].mxu0
      %v1339 = vadd.f32 0.0, %v1338
      %v1340 = vpop.f32.mrb[0].mxu0
      %v1341 = vadd.f32 0.0, %v1340
      %v1342 = vpop.f32.mrb[0].mxu0
      %v1343 = vpop.f32.mrb[0].mxu0
      %1344 = vdwg.mxu0
      %1345 = vmatprep.subr.bf16.mxu0 %v264
      %1346 = vmatpush1.bf16.msra.mxu0 %v263
      %1347 = vmatprep.subr.bf16.mxu0 %v269
      %1348 = vmatpush1.bf16.msra.mxu0 %v268
      %1349 = vmatprep.subr.bf16.mxu0 %v274
      %1350 = vmatpush1.bf16.msra.mxu0 %v273
      %1351 = vmatprep.subr.bf16.mxu0 %v279
      %1352 = vmatpush1.bf16.msra.mxu0 %v278
      %1353 = vmatprep.subr.bf16.mxu0 %v284
      %1354 = vmatpush1.bf16.msra.mxu0 %v283
      %1355 = vmatprep.subr.bf16.mxu0 %v289
      %1356 = vmatpush1.bf16.msra.mxu0 %v288
      %1357 = vmatprep.subr.bf16.mxu0 %v294
      %1358 = vmatpush1.bf16.msra.mxu0 %v293
      %1359 = vmatprep.subr.bf16.mxu0 %v299
      %1360 = vmatpush1.bf16.msra.mxu0 %v298
      %1361 = vmatprep.subr.bf16.mxu0 0
      %1362 = vmatpush1.bf16.msra.mxu0 0
      %1363 = vmatprep.subr.bf16.mxu0 0
      %1364 = vmatpush1.bf16.msra.mxu0 0
      %1365 = vmatprep.subr.bf16.mxu0 0
      %1366 = vmatpush1.bf16.msra.mxu0 0
      %1367 = vmatprep.subr.bf16.mxu0 0
      %1368 = vmatpush1.bf16.msra.mxu0 0
      %1369 = vmatprep.subr.bf16.mxu0 0
      %1370 = vmatpush1.bf16.msra.mxu0 0
      %1371 = vmatprep.subr.bf16.mxu0 0
      %1372 = vmatpush1.bf16.msra.mxu0 0
      %1373 = vmatprep.subr.bf16.mxu0 0
      %1374 = vmatpush1.bf16.msra.mxu0 0
      %1375 = vmatprep.subr.bf16.mxu0 0
      %1376 = vmatpush1.bf16.msra.mxu0 0
      %1377 = vmatprep.mubr.bf16.mxu0 0
      %1378 = vmatmul.mubr.bf16.gmra.mrb[0].mxu0 %v1303
      %v1379 = vpop.f32.mrb[0].mxu0
      %v1380 = vadd.f32 0.0, %v1379
      %v1381 = vpop.f32.mrb[0].mxu0
      %v1382 = vadd.f32 0.0, %v1381
      %v1383 = vpop.f32.mrb[0].mxu0
      %v1384 = vpop.f32.mrb[0].mxu0
      %1385 = vdwg.mxu0
      %1386 = vmatprep.subr.bf16.mxu0 0
      %1387 = vmatpush1.bf16.msra.mxu0 %v265
      %1388 = vmatprep.subr.bf16.mxu0 0
      %1389 = vmatpush1.bf16.msra.mxu0 %v270
      %1390 = vmatprep.subr.bf16.mxu0 0
      %1391 = vmatpush1.bf16.msra.mxu0 %v275
      %1392 = vmatprep.subr.bf16.mxu0 0
      %1393 = vmatpush1.bf16.msra.mxu0 %v280
      %1394 = vmatprep.subr.bf16.mxu0 0
      %1395 = vmatpush1.bf16.msra.mxu0 %v285
      %1396 = vmatprep.subr.bf16.mxu0 0
      %1397 = vmatpush1.bf16.msra.mxu0 %v290
      %1398 = vmatprep.subr.bf16.mxu0 0
      %1399 = vmatpush1.bf16.msra.mxu0 %v295
      %1400 = vmatprep.subr.bf16.mxu0 0
      %1401 = vmatpush1.bf16.msra.mxu0 %v300
      %1402 = vmatprep.subr.bf16.mxu0 0
      %1403 = vmatpush1.bf16.msra.mxu0 0
      %1404 = vmatprep.subr.bf16.mxu0 0
      %1405 = vmatpush1.bf16.msra.mxu0 0
      %1406 = vmatprep.subr.bf16.mxu0 0
      %1407 = vmatpush1.bf16.msra.mxu0 0
      %1408 = vmatprep.subr.bf16.mxu0 0
      %1409 = vmatpush1.bf16.msra.mxu0 0
      %1410 = vmatprep.subr.bf16.mxu0 0
      %1411 = vmatpush1.bf16.msra.mxu0 0
      %1412 = vmatprep.subr.bf16.mxu0 0
      %1413 = vmatpush1.bf16.msra.mxu0 0
      %1414 = vmatprep.subr.bf16.mxu0 0
      %1415 = vmatpush1.bf16.msra.mxu0 0
      %1416 = vmatprep.subr.bf16.mxu0 0
      %1417 = vmatpush1.bf16.msra.mxu0 0
      %1418 = vmatprep.mubr.bf16.mxu0 0
      %1419 = vmatmul.mubr.bf16.gmra.mrb[0].mxu0 %v1303
      %v1420 = vpop.f32.mrb[0].mxu0
      %v1421 = vadd.f32 0.0, %v1420
      %v1422 = vpop.f32.mrb[0].mxu0
      %v1423 = vpop.f32.mrb[0].mxu0
      %v1424 = vpop.f32.mrb[0].mxu0
      %1425 = vdwg.mxu0
      %v1426 = vadd.f32 %v1297, %v1339
      %v1427 = vadd.f32 %v1298, %v1341
      %v1428 = vadd.f32 %v1299, %v1380
      %v1429 = vadd.f32 %v1300, %v1382
      %v1430 = vadd.f32 %v1301, %v1421
      %v1431 = vxor.u32 %v1426, 2147483648
      %v1432 = vxor.u32 %v1427, 2147483648
      %v1433 = vxor.u32 %v1428, 2147483648
      %v1434 = vxor.u32 %v1429, 2147483648
      %v1435 = vmul.f32 %v1431, 1.442695
      %v1436 = vpow.pop %v1435
      %v1437 = vmul.f32 %v1432, 1.442695
      %v1438 = vpow.pop %v1437
      %v1439 = vmul.f32 %v1433, 1.442695
      %v1440 = vpow.pop %v1439
      %v1441 = vmul.f32 %v1434, 1.442695
      %v1442 = vpow.pop %v1441
      %v1443 = vadd.f32 %v1436, 1.0
      %v1444 = vadd.f32 %v1438, 1.0
      %v1445 = vadd.f32 %v1440, 1.0
      %v1446 = vadd.f32 %v1442, 1.0
      %v1447 = vrcp.pop %v1443
      %v1448 = vmul.f32 1.0, %v1447
      %v1449 = vrcp.pop %v1444
      %v1450 = vmul.f32 1.0, %v1449
      %v1451 = vrcp.pop %v1445
      %v1452 = vmul.f32 1.0, %v1451
      %v1453 = vrcp.pop %v1446
      %v1454 = vmul.f32 1.0, %v1453
      %v1455 = vtanh.pop %v1430
      %v1456 = vmul.f32 %v1448, %v1455
      %v1457 = vmul.f32 %v1450, %v1290
      %v1458 = vadd.f32 %v1456, %v1457
      %v1459 = vtanh.pop %v1458
      %v1460 = vmul.f32 %v1452, %v1459
      %v1461 = vmul.f32 %v1454, %v1460
      %v1462 = vsub.f32 1.0, %v1454
      %v1463 = vmul.f32 %v1462, %v1302
      %v1464 = vadd.f32 %v1461, %v1463
      %s1465 = sadd.s32 %s56, 5
      %v1466 = vstv %s1465
      %vm1467 = vcmp.lt.s32.totalorder %v1466, %v123
      %v1468 = vsel %vm1467, 1, 0
      %v1469 = vcvt.s32.f32 %v1468
      %1471 = vset.pattern.permute.xlu0 0
      %1472 = vperm.xlu0 %1471, %v1469
      %v1473 = vpop.permute.xlu0 %1472
      %v1475 = vmul.f32 %v1473, %v1458
      %v1476 = vsub.f32 1.0, %v1469
      %1478 = vset.pattern.permute.xlu0 0
      %1479 = vperm.xlu0 %1478, %v1476
      %v1480 = vpop.permute.xlu0 %1479
      %v1482 = vmul.f32 %v1480, %v1290
      %v1483 = vadd.f32 %v1475, %v1482
      %v1484 = vmul.f32 %v1473, %v1464
      %v1485 = vmul.f32 %v1480, %v1293
      %v1486 = vadd.f32 %v1484, %v1485
      %s1487 = scalar_lea.vmem [#allocation9], 40
      %1488 = vst [vmem:[%s1487] sm:$0xff] %v1484
      %s1489 = scalar_lea.vmem [#allocation4], 288
      %v1490 = vld [vmem:[%s1489] sm:$0xff]
      %v1491 = vld [vmem:[%s1489 + $0x8] sm:$0xff]
      %v1492 = vld [vmem:[%s1489 + $0x10] sm:$0xff]
      %v1493 = vld [vmem:[%s1489 + $0x18] sm:$0xff]
      %v1494 = vld [vmem:[%s1489 + $0x20] sm:$0xff]
      %v1495 = vld [vmem:[%s1489 + $0x28] sm:$0xff]
      %v1496 = vpack.c.bf16 %v1486, %v1486
      %1497 = vmatprep.subr.bf16.mxu0 %v262
      %1498 = vmatpush1.bf16.msra.mxu0 %v261
      %1499 = vmatprep.subr.bf16.mxu0 %v267
      %1500 = vmatpush1.bf16.msra.mxu0 %v266
      %1501 = vmatprep.subr.bf16.mxu0 %v272
      %1502 = vmatpush1.bf16.msra.mxu0 %v271
      %1503 = vmatprep.subr.bf16.mxu0 %v277
      %1504 = vmatpush1.bf16.msra.mxu0 %v276
      %1505 = vmatprep.subr.bf16.mxu0 %v282
      %1506 = vmatpush1.bf16.msra.mxu0 %v281
      %1507 = vmatprep.subr.bf16.mxu0 %v287
      %1508 = vmatpush1.bf16.msra.mxu0 %v286
      %1509 = vmatprep.subr.bf16.mxu0 %v292
      %1510 = vmatpush1.bf16.msra.mxu0 %v291
      %1511 = vmatprep.subr.bf16.mxu0 %v297
      %1512 = vmatpush1.bf16.msra.mxu0 %v296
      %1513 = vmatprep.subr.bf16.mxu0 0
      %1514 = vmatpush1.bf16.msra.mxu0 0
      %1515 = vmatprep.subr.bf16.mxu0 0
      %1516 = vmatpush1.bf16.msra.mxu0 0
      %1517 = vmatprep.subr.bf16.mxu0 0
      %1518 = vmatpush1.bf16.msra.mxu0 0
      %1519 = vmatprep.subr.bf16.mxu0 0
      %1520 = vmatpush1.bf16.msra.mxu0 0
      %1521 = vmatprep.subr.bf16.mxu0 0
      %1522 = vmatpush1.bf16.msra.mxu0 0
      %1523 = vmatprep.subr.bf16.mxu0 0
      %1524 = vmatpush1.bf16.msra.mxu0 0
      %1525 = vmatprep.subr.bf16.mxu0 0
      %1526 = vmatpush1.bf16.msra.mxu0 0
      %1527 = vmatprep.subr.bf16.mxu0 0
      %1528 = vmatpush1.bf16.msra.mxu0 0
      %1529 = vmatprep.mubr.bf16.mxu0 0
      %1530 = vmatmul.mubr.bf16.gmra.mrb[0].mxu0 %v1496
      %v1531 = vpop.f32.mrb[0].mxu0
      %v1532 = vadd.f32 0.0, %v1531
      %v1533 = vpop.f32.mrb[0].mxu0
      %v1534 = vadd.f32 0.0, %v1533
      %v1535 = vpop.f32.mrb[0].mxu0
      %v1536 = vpop.f32.mrb[0].mxu0
      %1537 = vdwg.mxu0
      %1538 = vmatprep.subr.bf16.mxu0 %v264
      %1539 = vmatpush1.bf16.msra.mxu0 %v263
      %1540 = vmatprep.subr.bf16.mxu0 %v269
      %1541 = vmatpush1.bf16.msra.mxu0 %v268
      %1542 = vmatprep.subr.bf16.mxu0 %v274
      %1543 = vmatpush1.bf16.msra.mxu0 %v273
      %1544 = vmatprep.subr.bf16.mxu0 %v279
      %1545 = vmatpush1.bf16.msra.mxu0 %v278
      %1546 = vmatprep.subr.bf16.mxu0 %v284
      %1547 = vmatpush1.bf16.msra.mxu0 %v283
      %1548 = vmatprep.subr.bf16.mxu0 %v289
      %1549 = vmatpush1.bf16.msra.mxu0 %v288
      %1550 = vmatprep.subr.bf16.mxu0 %v294
      %1551 = vmatpush1.bf16.msra.mxu0 %v293
      %1552 = vmatprep.subr.bf16.mxu0 %v299
      %1553 = vmatpush1.bf16.msra.mxu0 %v298
      %1554 = vmatprep.subr.bf16.mxu0 0
      %1555 = vmatpush1.bf16.msra.mxu0 0
      %1556 = vmatprep.subr.bf16.mxu0 0
      %1557 = vmatpush1.bf16.msra.mxu0 0
      %1558 = vmatprep.subr.bf16.mxu0 0
      %1559 = vmatpush1.bf16.msra.mxu0 0
      %1560 = vmatprep.subr.bf16.mxu0 0
      %1561 = vmatpush1.bf16.msra.mxu0 0
      %1562 = vmatprep.subr.bf16.mxu0 0
      %1563 = vmatpush1.bf16.msra.mxu0 0
      %1564 = vmatprep.subr.bf16.mxu0 0
      %1565 = vmatpush1.bf16.msra.mxu0 0
      %1566 = vmatprep.subr.bf16.mxu0 0
      %1567 = vmatpush1.bf16.msra.mxu0 0
      %1568 = vmatprep.subr.bf16.mxu0 0
      %1569 = vmatpush1.bf16.msra.mxu0 0
      %1570 = vmatprep.mubr.bf16.mxu0 0
      %1571 = vmatmul.mubr.bf16.gmra.mrb[0].mxu0 %v1496
      %v1572 = vpop.f32.mrb[0].mxu0
      %v1573 = vadd.f32 0.0, %v1572
      %v1574 = vpop.f32.mrb[0].mxu0
      %v1575 = vadd.f32 0.0, %v1574
      %v1576 = vpop.f32.mrb[0].mxu0
      %v1577 = vpop.f32.mrb[0].mxu0
      %1578 = vdwg.mxu0
      %1579 = vmatprep.subr.bf16.mxu0 0
      %1580 = vmatpush1.bf16.msra.mxu0 %v265
      %1581 = vmatprep.subr.bf16.mxu0 0
      %1582 = vmatpush1.bf16.msra.mxu0 %v270
      %1583 = vmatprep.subr.bf16.mxu0 0
      %1584 = vmatpush1.bf16.msra.mxu0 %v275
      %1585 = vmatprep.subr.bf16.mxu0 0
      %1586 = vmatpush1.bf16.msra.mxu0 %v280
      %1587 = vmatprep.subr.bf16.mxu0 0
      %1588 = vmatpush1.bf16.msra.mxu0 %v285
      %1589 = vmatprep.subr.bf16.mxu0 0
      %1590 = vmatpush1.bf16.msra.mxu0 %v290
      %1591 = vmatprep.subr.bf16.mxu0 0
      %1592 = vmatpush1.bf16.msra.mxu0 %v295
      %1593 = vmatprep.subr.bf16.mxu0 0
      %1594 = vmatpush1.bf16.msra.mxu0 %v300
      %1595 = vmatprep.subr.bf16.mxu0 0
      %1596 = vmatpush1.bf16.msra.mxu0 0
      %1597 = vmatprep.subr.bf16.mxu0 0
      %1598 = vmatpush1.bf16.msra.mxu0 0
      %1599 = vmatprep.subr.bf16.mxu0 0
      %1600 = vmatpush1.bf16.msra.mxu0 0
      %1601 = vmatprep.subr.bf16.mxu0 0
      %1602 = vmatpush1.bf16.msra.mxu0 0
      %1603 = vmatprep.subr.bf16.mxu0 0
      %1604 = vmatpush1.bf16.msra.mxu0 0
      %1605 = vmatprep.subr.bf16.mxu0 0
      %1606 = vmatpush1.bf16.msra.mxu0 0
      %1607 = vmatprep.subr.bf16.mxu0 0
      %1608 = vmatpush1.bf16.msra.mxu0 0
      %1609 = vmatprep.subr.bf16.mxu0 0
      %1610 = vmatpush1.bf16.msra.mxu0 0
      %1611 = vmatprep.mubr.bf16.mxu0 0
      %1612 = vmatmul.mubr.bf16.gmra.mrb[0].mxu0 %v1496
      %v1613 = vpop.f32.mrb[0].mxu0
      %v1614 = vadd.f32 0.0, %v1613
      %v1615 = vpop.f32.mrb[0].mxu0
      %v1616 = vpop.f32.mrb[0].mxu0
      %v1617 = vpop.f32.mrb[0].mxu0
      %1618 = vdwg.mxu0
      %v1619 = vadd.f32 %v1490, %v1532
      %v1620 = vadd.f32 %v1491, %v1534
      %v1621 = vadd.f32 %v1492, %v1573
      %v1622 = vadd.f32 %v1493, %v1575
      %v1623 = vadd.f32 %v1494, %v1614
      %v1624 = vxor.u32 %v1619, 2147483648
      %v1625 = vxor.u32 %v1620, 2147483648
      %v1626 = vxor.u32 %v1621, 2147483648
      %v1627 = vxor.u32 %v1622, 2147483648
      %v1628 = vmul.f32 %v1624, 1.442695
      %v1629 = vpow.pop %v1628
      %v1630 = vmul.f32 %v1625, 1.442695
      %v1631 = vpow.pop %v1630
      %v1632 = vmul.f32 %v1626, 1.442695
      %v1633 = vpow.pop %v1632
      %v1634 = vmul.f32 %v1627, 1.442695
      %v1635 = vpow.pop %v1634
      %v1636 = vadd.f32 %v1629, 1.0
      %v1637 = vadd.f32 %v1631, 1.0
      %v1638 = vadd.f32 %v1633, 1.0
      %v1639 = vadd.f32 %v1635, 1.0
      %v1640 = vrcp.pop %v1636
      %v1641 = vmul.f32 1.0, %v1640
      %v1642 = vrcp.pop %v1637
      %v1643 = vmul.f32 1.0, %v1642
      %v1644 = vrcp.pop %v1638
      %v1645 = vmul.f32 1.0, %v1644
      %v1646 = vrcp.pop %v1639
      %v1647 = vmul.f32 1.0, %v1646
      %v1648 = vtanh.pop %v1623
      %v1649 = vmul.f32 %v1641, %v1648
      %v1650 = vmul.f32 %v1643, %v1483
      %v1651 = vadd.f32 %v1649, %v1650
      %v1652 = vtanh.pop %v1651
      %v1653 = vmul.f32 %v1645, %v1652
      %v1654 = vmul.f32 %v1647, %v1653
      %v1655 = vsub.f32 1.0, %v1647
      %v1656 = vmul.f32 %v1655, %v1495
      %v1657 = vadd.f32 %v1654, %v1656
      %s1658 = sadd.s32 %s56, 6
      %v1659 = vstv %s1658
      %vm1660 = vcmp.lt.s32.totalorder %v1659, %v123
      %v1661 = vsel %vm1660, 1, 0
      %v1662 = vcvt.s32.f32 %v1661
      %1664 = vset.pattern.permute.xlu0 0
      %1665 = vperm.xlu0 %1664, %v1662
      %v1666 = vpop.permute.xlu0 %1665
      %v1668 = vmul.f32 %v1666, %v1651
      %v1669 = vsub.f32 1.0, %v1662
      %1671 = vset.pattern.permute.xlu0 0
      %1672 = vperm.xlu0 %1671, %v1669
      %v1673 = vpop.permute.xlu0 %1672
      %v1675 = vmul.f32 %v1673, %v1483
      %v1676 = vadd.f32 %v1668, %v1675
      %v1677 = vmul.f32 %v1666, %v1657
      %v1678 = vmul.f32 %v1673, %v1486
      %v1679 = vadd.f32 %v1677, %v1678
      %s1680 = scalar_lea.vmem [#allocation9], 48
      %1681 = vst [vmem:[%s1680] sm:$0xff] %v1677
      %s1682 = scalar_lea.vmem [#allocation4], 336
      %v1683 = vld [vmem:[%s1682] sm:$0xff]
      %v1684 = vld [vmem:[%s1682 + $0x8] sm:$0xff]
      %v1685 = vld [vmem:[%s1682 + $0x10] sm:$0xff]
      %v1686 = vld [vmem:[%s1682 + $0x18] sm:$0xff]
      %v1687 = vld [vmem:[%s1682 + $0x20] sm:$0xff]
      %v1688 = vld [vmem:[%s1682 + $0x28] sm:$0xff]
      %v1689 = vpack.c.bf16 %v1679, %v1679
      %1690 = vmatprep.subr.bf16.mxu0 %v262
      %1691 = vmatpush1.bf16.msra.mxu0 %v261
      %1692 = vmatprep.subr.bf16.mxu0 %v267
      %1693 = vmatpush1.bf16.msra.mxu0 %v266
      %1694 = vmatprep.subr.bf16.mxu0 %v272
      %1695 = vmatpush1.bf16.msra.mxu0 %v271
      %1696 = vmatprep.subr.bf16.mxu0 %v277
      %1697 = vmatpush1.bf16.msra.mxu0 %v276
      %1698 = vmatprep.subr.bf16.mxu0 %v282
      %1699 = vmatpush1.bf16.msra.mxu0 %v281
      %1700 = vmatprep.subr.bf16.mxu0 %v287
      %1701 = vmatpush1.bf16.msra.mxu0 %v286
      %1702 = vmatprep.subr.bf16.mxu0 %v292
      %1703 = vmatpush1.bf16.msra.mxu0 %v291
      %1704 = vmatprep.subr.bf16.mxu0 %v297
      %1705 = vmatpush1.bf16.msra.mxu0 %v296
      %1706 = vmatprep.subr.bf16.mxu0 0
      %1707 = vmatpush1.bf16.msra.mxu0 0
      %1708 = vmatprep.subr.bf16.mxu0 0
      %1709 = vmatpush1.bf16.msra.mxu0 0
      %1710 = vmatprep.subr.bf16.mxu0 0
      %1711 = vmatpush1.bf16.msra.mxu0 0
      %1712 = vmatprep.subr.bf16.mxu0 0
      %1713 = vmatpush1.bf16.msra.mxu0 0
      %1714 = vmatprep.subr.bf16.mxu0 0
      %1715 = vmatpush1.bf16.msra.mxu0 0
      %1716 = vmatprep.subr.bf16.mxu0 0
      %1717 = vmatpush1.bf16.msra.mxu0 0
      %1718 = vmatprep.subr.bf16.mxu0 0
      %1719 = vmatpush1.bf16.msra.mxu0 0
      %1720 = vmatprep.subr.bf16.mxu0 0
      %1721 = vmatpush1.bf16.msra.mxu0 0
      %1722 = vmatprep.mubr.bf16.mxu0 0
      %1723 = vmatmul.mubr.bf16.gmra.mrb[0].mxu0 %v1689
      %v1724 = vpop.f32.mrb[0].mxu0
      %v1725 = vadd.f32 0.0, %v1724
      %v1726 = vpop.f32.mrb[0].mxu0
      %v1727 = vadd.f32 0.0, %v1726
      %v1728 = vpop.f32.mrb[0].mxu0
      %v1729 = vpop.f32.mrb[0].mxu0
      %1730 = vdwg.mxu0
      %1731 = vmatprep.subr.bf16.mxu0 %v264
      %1732 = vmatpush1.bf16.msra.mxu0 %v263
      %1733 = vmatprep.subr.bf16.mxu0 %v269
      %1734 = vmatpush1.bf16.msra.mxu0 %v268
      %1735 = vmatprep.subr.bf16.mxu0 %v274
      %1736 = vmatpush1.bf16.msra.mxu0 %v273
      %1737 = vmatprep.subr.bf16.mxu0 %v279
      %1738 = vmatpush1.bf16.msra.mxu0 %v278
      %1739 = vmatprep.subr.bf16.mxu0 %v284
      %1740 = vmatpush1.bf16.msra.mxu0 %v283
      %1741 = vmatprep.subr.bf16.mxu0 %v289
      %1742 = vmatpush1.bf16.msra.mxu0 %v288
      %1743 = vmatprep.subr.bf16.mxu0 %v294
      %1744 = vmatpush1.bf16.msra.mxu0 %v293
      %1745 = vmatprep.subr.bf16.mxu0 %v299
      %1746 = vmatpush1.bf16.msra.mxu0 %v298
      %1747 = vmatprep.subr.bf16.mxu0 0
      %1748 = vmatpush1.bf16.msra.mxu0 0
      %1749 = vmatprep.subr.bf16.mxu0 0
      %1750 = vmatpush1.bf16.msra.mxu0 0
      %1751 = vmatprep.subr.bf16.mxu0 0
      %1752 = vmatpush1.bf16.msra.mxu0 0
      %1753 = vmatprep.subr.bf16.mxu0 0
      %1754 = vmatpush1.bf16.msra.mxu0 0
      %1755 = vmatprep.subr.bf16.mxu0 0
      %1756 = vmatpush1.bf16.msra.mxu0 0
      %1757 = vmatprep.subr.bf16.mxu0 0
      %1758 = vmatpush1.bf16.msra.mxu0 0
      %1759 = vmatprep.subr.bf16.mxu0 0
      %1760 = vmatpush1.bf16.msra.mxu0 0
      %1761 = vmatprep.subr.bf16.mxu0 0
      %1762 = vmatpush1.bf16.msra.mxu0 0
      %1763 = vmatprep.mubr.bf16.mxu0 0
      %1764 = vmatmul.mubr.bf16.gmra.mrb[0].mxu0 %v1689
      %v1765 = vpop.f32.mrb[0].mxu0
      %v1766 = vadd.f32 0.0, %v1765
      %v1767 = vpop.f32.mrb[0].mxu0
      %v1768 = vadd.f32 0.0, %v1767
      %v1769 = vpop.f32.mrb[0].mxu0
      %v1770 = vpop.f32.mrb[0].mxu0
      %1771 = vdwg.mxu0
      %1772 = vmatprep.subr.bf16.mxu0 0
      %1773 = vmatpush1.bf16.msra.mxu0 %v265
      %1774 = vmatprep.subr.bf16.mxu0 0
      %1775 = vmatpush1.bf16.msra.mxu0 %v270
      %1776 = vmatprep.subr.bf16.mxu0 0
      %1777 = vmatpush1.bf16.msra.mxu0 %v275
      %1778 = vmatprep.subr.bf16.mxu0 0
      %1779 = vmatpush1.bf16.msra.mxu0 %v280
      %1780 = vmatprep.subr.bf16.mxu0 0
      %1781 = vmatpush1.bf16.msra.mxu0 %v285
      %1782 = vmatprep.subr.bf16.mxu0 0
      %1783 = vmatpush1.bf16.msra.mxu0 %v290
      %1784 = vmatprep.subr.bf16.mxu0 0
      %1785 = vmatpush1.bf16.msra.mxu0 %v295
      %1786 = vmatprep.subr.bf16.mxu0 0
      %1787 = vmatpush1.bf16.msra.mxu0 %v300
      %1788 = vmatprep.subr.bf16.mxu0 0
      %1789 = vmatpush1.bf16.msra.mxu0 0
      %1790 = vmatprep.subr.bf16.mxu0 0
      %1791 = vmatpush1.bf16.msra.mxu0 0
      %1792 = vmatprep.subr.bf16.mxu0 0
      %1793 = vmatpush1.bf16.msra.mxu0 0
      %1794 = vmatprep.subr.bf16.mxu0 0
      %1795 = vmatpush1.bf16.msra.mxu0 0
      %1796 = vmatprep.subr.bf16.mxu0 0
      %1797 = vmatpush1.bf16.msra.mxu0 0
      %1798 = vmatprep.subr.bf16.mxu0 0
      %1799 = vmatpush1.bf16.msra.mxu0 0
      %1800 = vmatprep.subr.bf16.mxu0 0
      %1801 = vmatpush1.bf16.msra.mxu0 0
      %1802 = vmatprep.subr.bf16.mxu0 0
      %1803 = vmatpush1.bf16.msra.mxu0 0
      %1804 = vmatprep.mubr.bf16.mxu0 0
      %1805 = vmatmul.mubr.bf16.gmra.mrb[0].mxu0 %v1689
      %v1806 = vpop.f32.mrb[0].mxu0
      %v1807 = vadd.f32 0.0, %v1806
      %v1808 = vpop.f32.mrb[0].mxu0
      %v1809 = vpop.f32.mrb[0].mxu0
      %v1810 = vpop.f32.mrb[0].mxu0
      %1811 = vdwg.mxu0
      %v1812 = vadd.f32 %v1683, %v1725
      %v1813 = vadd.f32 %v1684, %v1727
      %v1814 = vadd.f32 %v1685, %v1766
      %v1815 = vadd.f32 %v1686, %v1768
      %v1816 = vadd.f32 %v1687, %v1807
      %v1817 = vxor.u32 %v1812, 2147483648
      %v1818 = vxor.u32 %v1813, 2147483648
      %v1819 = vxor.u32 %v1814, 2147483648
      %v1820 = vxor.u32 %v1815, 2147483648
      %v1821 = vmul.f32 %v1817, 1.442695
      %v1822 = vpow.pop %v1821
      %v1823 = vmul.f32 %v1818, 1.442695
      %v1824 = vpow.pop %v1823
      %v1825 = vmul.f32 %v1819, 1.442695
      %v1826 = vpow.pop %v1825
      %v1827 = vmul.f32 %v1820, 1.442695
      %v1828 = vpow.pop %v1827
      %v1829 = vadd.f32 %v1822, 1.0
      %v1830 = vadd.f32 %v1824, 1.0
      %v1831 = vadd.f32 %v1826, 1.0
      %v1832 = vadd.f32 %v1828, 1.0
      %v1833 = vrcp.pop %v1829
      %v1834 = vmul.f32 1.0, %v1833
      %v1835 = vrcp.pop %v1830
      %v1836 = vmul.f32 1.0, %v1835
      %v1837 = vrcp.pop %v1831
      %v1838 = vmul.f32 1.0, %v1837
      %v1839 = vrcp.pop %v1832
      %v1840 = vmul.f32 1.0, %v1839
      %v1841 = vtanh.pop %v1816
      %v1842 = vmul.f32 %v1834, %v1841
      %v1843 = vmul.f32 %v1836, %v1676
      %v1844 = vadd.f32 %v1842, %v1843
      %v1845 = vtanh.pop %v1844
      %v1846 = vmul.f32 %v1838, %v1845
      %v1847 = vmul.f32 %v1840, %v1846
      %v1848 = vsub.f32 1.0, %v1840
      %v1849 = vmul.f32 %v1848, %v1688
      %v1850 = vadd.f32 %v1847, %v1849
      %s1851 = sadd.s32 %s56, 7
      %v1852 = vstv %s1851
      %vm1853 = vcmp.lt.s32.totalorder %v1852, %v123
      %v1854 = vsel %vm1853, 1, 0
      %v1855 = vcvt.s32.f32 %v1854
      %1857 = vset.pattern.permute.xlu0 0
      %1858 = vperm.xlu0 %1857, %v1855
      %v1859 = vpop.permute.xlu0 %1858
      %v1861 = vmul.f32 %v1859, %v1844
      %v1862 = vsub.f32 1.0, %v1855
      %1864 = vset.pattern.permute.xlu0 0
      %1865 = vperm.xlu0 %1864, %v1862
      %v1866 = vpop.permute.xlu0 %1865
      %v1868 = vmul.f32 %v1866, %v1676
      %v1869 = vadd.f32 %v1861, %v1868
      %v1870 = vmul.f32 %v1859, %v1850
      %v1871 = vmul.f32 %v1866, %v1679
      %v1872 = vadd.f32 %v1870, %v1871
      %s1873 = scalar_lea.vmem [#allocation9], 56
      %1874 = vst [vmem:[%s1873] sm:$0xff] %v1870
      %1875 = vst [vmem:[#allocation10] sm:$0xff] %v1872
      %1876 = vst [vmem:[#allocation12] sm:$0xff] %v1869
    $region33: #{tpu_custom_call.1} parent=1 // pred_fallthru
      _
    // Predicated region
    $region34: #{tpu_custom_call.1} parent=1 // pred_check
      _
    $region35: #{tpu_custom_call.1} parent=1 // pred_check_branch
      %1878 = sbr.rel (0) target = $region37
    $region36: #{tpu_custom_call.1} parent=1 // pred_region
      %s1880 = ssub.s32 1024, 1024
      %1881 = vsyncadd [#allocation6], %s1880
      %s1882 = sshll.u32 [#allocation9], 4
      %s1883 = int_to_ptr.vmem [resolvable:$true] %s1882
      %1888 = dma.vmem_to_hbm [thread:$0]  %s1883, 1024, %s4, [#allocation6], 128, 128, 8
    $region37: #{tpu_custom_call.1} parent=1 // pred_fallthru
      _
    // Predicated region
    $region38: #{tpu_custom_call.1} parent=1 // pred_check
      _
    $region39: #{tpu_custom_call.1} parent=1 // pred_check_branch
      %1890 = sbr.rel (0) target = $region41
    $region40: #{tpu_custom_call.1} parent=1 // pred_region
      %s1892 = ssub.s32 128, 128
      %1893 = vsyncadd [#allocation11], %s1892
      %s1895 = sshll.u32 [#allocation10], 4
      %s1896 = int_to_ptr.vmem [resolvable:$true] %s1895
      %1898 = dma.vmem_to_hbm [thread:$0]  %s1896, 128, %s5, [#allocation11]
    $region41: #{tpu_custom_call.1} parent=1 // pred_fallthru
      _
    // Predicated region
    $region42: #{tpu_custom_call.1} parent=1 // pred_check
      _
    $region43: #{tpu_custom_call.1} parent=1 // pred_check_branch
      %1900 = sbr.rel (0) target = $region45
    $region44: #{tpu_custom_call.1} parent=1 // pred_region
      %s1902 = ssub.s32 128, 128
      %1903 = vsyncadd [#allocation11], %s1902
      %s1905 = sshll.u32 [#allocation12], 4
      %s1906 = int_to_ptr.vmem [resolvable:$true] %s1905
      %1908 = dma.vmem_to_hbm [thread:$0]  %s1906, 128, %s6, [#allocation11]
    $region45: #{tpu_custom_call.1} parent=1 // pred_fallthru
      _
    // Predicated region
    $region46: #{tpu_custom_call.1} parent=1 // pred_check
      _
    $region47: #{tpu_custom_call.1} parent=1 // pred_check_branch
      %1910 = sbr.rel (0) target = $region49
    $region48: #{tpu_custom_call.1} parent=1 // pred_region
      %1911 = dma.done [#allocation6], 1024
    $region49: #{tpu_custom_call.1} parent=1 // pred_fallthru
      _
    // Predicated region
    $region50: #{tpu_custom_call.1} parent=1 // pred_check
      _
    $region51: #{tpu_custom_call.1} parent=1 // pred_check_branch
      %1913 = sbr.rel (0) target = $region53
    $region52: #{tpu_custom_call.1} parent=1 // pred_region
      %1914 = dma.done [#allocation11], 128
    $region53: #{tpu_custom_call.1} parent=1 // pred_fallthru
      _
    // Predicated region
    $region54: #{tpu_custom_call.1} parent=1 // pred_check
      _
    $region55: #{tpu_custom_call.1} parent=1 // pred_check_branch
      %1916 = sbr.rel (0) target = $region57
    $region56: #{tpu_custom_call.1} parent=1 // pred_region
      %1917 = dma.done [#allocation11], 128
    $region57: #{tpu_custom_call.1} parent=1 // pred_fallthru
      _
    %1918 = vsyncpa [#allocation5], 1
    %1919 = vsyncpa [#allocation8], 1
    %1920 = vsyncpa [#allocation6], 1
    %1921 = vsyncpa [#allocation11], 1

</llo_original>
